<compile_context>
chip_gen: v7x
topology: tpu7x:2x2x1
jax: 0.10.0
libtpu: 0.0.40
codegen_flags: <defaults>
</compile_context>

<pallas_src>
import math

import jax
import jax.numpy as jnp
from jax.experimental import pallas as pl
from jax.experimental.pallas import tpu as pltpu

# -------------------- synthetic config (stand-in for lib.config.cfg) ----------
B = 2               # batch size
N = 128             # points per cloud
FEAT_C = 32         # cfg.RPN.FP_MLPS[0][-1] -> feature_channel
H = W = 16          # image size for PSP branch
NUM_REG = 8         # rpn regression channels (>=7 so a 7-dof roi can be decoded)
K_ROIS = 4          # proposals kept by the (simplified) proposal layer
SCORE_THRESH = 0.3  # cfg.RPN.SCORE_THRESH
NUM_CLASSES = 1

# lane layout of the single packed (BN, 128) output slab
HEAD_PAD = 128
RPN_CLS_COL = FEAT_C                        # 32
RPN_REG_COL = RPN_CLS_COL + 1               # 33..40
SEG_COL = RPN_REG_COL + NUM_REG             # 41
RCNN_CLS_COL = 48
RCNN_REG_COL = RCNN_CLS_COL + NUM_CLASSES   # 49..55

# sigmoid(s) > t  <=>  s > logit(t): exact, and removes exp/reciprocal.
LOGIT_THRESH = math.log(SCORE_THRESH / (1.0 - SCORE_THRESH))


# ============================ fused Pallas kernel ==============================
def _pointrcnn_fused_kernel(
    in_ref,                                     # (TM, 8) f32: [x,y,z, r,g,b, 0,0]
    w_in_ref, b_in_ref,                         # fused first layer (8,2C)/(1,2C)
    rpn_w2_ref, rpn_b2_ref,                     # backbone layer 2 (C,C)/(1,C)
    w_big_ref, b_big_ref,                       # [rpn head | merge_down] (2C,128+C)
    rcnn_wf_ref, rcnn_ws_ref, rcnn_wd_ref, rcnn_b1_ref,
    rcnn_wh_ref, rcnn_bh_ref,                   # rcnn head slab (C,128)/(1,128)
    out_ref,                                    # (TM, 128) f32 packed slab
):
    f32 = jnp.float32
    bf16 = jnp.bfloat16
    C = FEAT_C

    x = in_ref[...]                                               # (TM, 8) f32

    # ---- fused first layer: one matmul -> [pts@rpn_w1 | pix@psp_w] -----------
    # TODO(synk): real RPN is a PointNet++ SA/FP backbone and the image branch
    #             is PSPNet; both replaced by shape-compatible pointwise MLPs.
    h0 = jnp.dot(x.astype(bf16), w_in_ref[...],
                 preferred_element_type=f32) + b_in_ref[...]
    h0 = jnp.maximum(h0, 0.0)                                     # (TM, 2C)
    h = h0[:, :C]                                                 # rpn hidden
    imf = h0[:, C:]                                               # img feature

    # ---- backbone layer 2 -> feat ---------------------------------------------
    feat = jnp.dot(h.astype(bf16), rpn_w2_ref[...],
                   preferred_element_type=f32) + rpn_b2_ref[...]
    feat = jnp.maximum(feat, 0.0)                                 # (TM, C)

    # ---- one MXU pass over [feat | imf]: rpn head slab + merge_down ----------
    # w_big = [[rpn_wh, mrg_wp], [0, mrg_wi]]  (concat-free merge_down).
    fi = jnp.concatenate([feat, imf], axis=-1).astype(bf16)       # (TM, 2C)
    hm = jnp.dot(fi, w_big_ref[...], preferred_element_type=f32) + b_big_ref[...]
    head = hm[:, :HEAD_PAD]                  # rpn cls|reg packed at lanes 32..40
    merged = jnp.maximum(hm[:, HEAD_PAD:], 0.0)                   # (TM, C)

    # ---- seg mask: exact logit-domain threshold -------------------------------
    scores_raw = head[:, RPN_CLS_COL:RPN_CLS_COL + 1]             # (TM, 1)
    seg = (scores_raw > LOGIT_THRESH).astype(f32)                 # (TM, 1)

    # ---- point depth (feeds only the RCNN head) -------------------------------
    pts = x[:, 0:3]
    depth = jnp.sqrt(jnp.sum(pts * pts, axis=-1, keepdims=True))  # (TM, 1)

    # ---- RCNN head stand-in: concat([merged, seg, depth]) folded in -----------
    # TODO(synk): RCNNNet (ROI pooling + PointNet) replaced by a per-point head.
    hr = (jnp.dot(merged.astype(bf16), rcnn_wf_ref[...],
                  preferred_element_type=f32)
          + seg * rcnn_ws_ref[...]
          + depth * rcnn_wd_ref[...]
          + rcnn_b1_ref[...])
    hr = jnp.maximum(hr, 0.0)
    rcnn = jnp.dot(hr.astype(bf16), rcnn_wh_ref[...],
                   preferred_element_type=f32) + rcnn_bh_ref[...]  # lanes 48..55

    # ---- single lane-dense output slab ----------------------------------------
    # head is zero outside lanes 32..40, rcnn outside 48..55, so one add packs
    # both; feat and seg land via cheap masked column stores.
    out_ref[...] = head + rcnn
    out_ref[:, 0:C] = feat
    out_ref[:, SEG_COL:SEG_COL + 1] = seg


def pointrcnn_fused(in8, params):
    """One pallas_call over the collapsed (B*N, 8) fused point/pixel input."""
    BN = in8.shape[0]
    TM = min(128, BN)
    assert BN % TM == 0 and TM % 8 == 0
    grid = (BN // TM,)

    def row_spec(lanes):
        return pl.BlockSpec((TM, lanes), lambda i: (i, 0))

    def resident_spec(arr):                     # weights stay VMEM-resident
        return pl.BlockSpec(arr.shape, lambda i: (0, 0))

    in_specs = [row_spec(in8.shape[1])] + [resident_spec(p) for p in params]

    C = FEAT_C
    flops = 2 * BN * (8 * 2 * C + C * C + 2 * C * (HEAD_PAD + C)
                      + C * C + C * HEAD_PAD)
    bytes_accessed = (int(in8.size) * in8.dtype.itemsize
                      + sum(int(p.size) * p.dtype.itemsize for p in params)
                      + BN * HEAD_PAD * 4)

    return pl.pallas_call(
        _pointrcnn_fused_kernel,
        out_shape=jax.ShapeDtypeStruct((BN, HEAD_PAD), jnp.float32),
        grid_spec=pltpu.PrefetchScalarGridSpec(
            num_scalar_prefetch=0,
            grid=grid,
            in_specs=in_specs,
            out_specs=row_spec(HEAD_PAD)),
        compiler_params=pltpu.CompilerParams(
            dimension_semantics=("parallel",)),
        cost_estimate=pl.CostEstimate(
            flops=int(flops),
            transcendentals=int(BN),            # depth sqrt
            bytes_accessed=int(bytes_accessed)),
    )(in8, *params)


# ============================ parameter init ==================================
def init_linear(key, cin, cout):
    kw, kb = jax.random.split(key)
    w = jax.random.normal(kw, (cin, cout), jnp.float32) / jnp.sqrt(float(cin))
    b = jax.random.normal(kb, (1, cout), jnp.float32) * 0.01
    return w, b


# ============================ PointRCNN module ================================
class PointRCNN:
    def __init__(self, num_classes, key):
        ks = jax.random.split(key, 10)
        self.num_classes = num_classes
        C = FEAT_C
        f32 = jnp.float32
        bf16 = jnp.bfloat16

        # RPN backbone stand-in (two pointwise layers)
        rpn_w1, rpn_b1 = init_linear(ks[0], 3, C)
        rpn_w2, rpn_b2 = init_linear(ks[1], C, C)
        # RPN cls / reg heads
        rpn_cls_w, rpn_cls_b = init_linear(ks[2], C, 1)
        rpn_reg_w, rpn_reg_b = init_linear(ks[3], C, NUM_REG)
        # PSP stand-in (1x1 conv) — commutes with the point->pixel gather
        psp_w, psp_b = init_linear(ks[4], 3, C)
        # merge_down: 2C->C SharedMLP split into point-half / image-half
        # (BN folds to identity at deterministic init: gamma=1, beta=0, eval stats)
        mrg_wp, mrg_b = init_linear(ks[5], C, C)
        mrg_wi, _ = init_linear(ks[6], C, C)
        # RCNN stand-in: (C+2)->C first layer split into [feat | seg | depth]
        rcnn_w1, rcnn_b1 = init_linear(ks[7], C + 2, C)
        rcnn_cls_w, rcnn_cls_b = init_linear(ks[8], C, num_classes)
        rcnn_reg_w, rcnn_reg_b = init_linear(ks[9], C, 7)

        # --- fused first layer: block-diag [rpn_w1 (xyz) | psp_w (rgb)] -------
        w_in = (jnp.zeros((8, 2 * C), f32)
                .at[0:3, 0:C].set(rpn_w1)
                .at[3:6, C:2 * C].set(psp_w))
        b_in = jnp.concatenate([rpn_b1, psp_b], axis=-1)            # (1, 2C)

        # --- rpn cls|reg packed at lanes 32..40 of a (C, 128) slab ------------
        rpn_wh = (jnp.zeros((C, HEAD_PAD), f32)
                  .at[:, RPN_CLS_COL:RPN_CLS_COL + 1].set(rpn_cls_w)
                  .at[:, RPN_REG_COL:RPN_REG_COL + NUM_REG].set(rpn_reg_w))
        rpn_bh = (jnp.zeros((1, HEAD_PAD), f32)
                  .at[:, RPN_CLS_COL:RPN_CLS_COL + 1].set(rpn_cls_b)
                  .at[:, RPN_REG_COL:RPN_REG_COL + NUM_REG].set(rpn_reg_b))

        # --- single (2C, 128+C) slab: [[rpn_wh, mrg_wp], [0, mrg_wi]] ---------
        w_big = (jnp.zeros((2 * C, HEAD_PAD + C), f32)
                 .at[0:C, 0:HEAD_PAD].set(rpn_wh)
                 .at[0:C, HEAD_PAD:].set(mrg_wp)
                 .at[C:, HEAD_PAD:].set(mrg_wi))
        b_big = jnp.concatenate([rpn_bh, mrg_b], axis=-1)           # (1, 128+C)

        # --- rcnn first layer split + cls|reg packed at lanes 48..55 ----------
        rcnn_wf = rcnn_w1[:C, :]
        rcnn_ws = rcnn_w1[C:C + 1, :]
        rcnn_wd = rcnn_w1[C + 1:C + 2, :]
        rcnn_wh = (jnp.zeros((C, HEAD_PAD), f32)
                   .at[:, RCNN_CLS_COL:RCNN_CLS_COL + num_classes].set(rcnn_cls_w)
                   .at[:, RCNN_REG_COL:RCNN_REG_COL + 7].set(rcnn_reg_w))
        rcnn_bh = (jnp.zeros((1, HEAD_PAD), f32)
                   .at[:, RCNN_CLS_COL:RCNN_CLS_COL + num_classes].set(rcnn_cls_b)
                   .at[:, RCNN_REG_COL:RCNN_REG_COL + 7].set(rcnn_reg_b))

        # MXU operands cast to bf16 once; biases / elementwise weights stay f32.
        self._params = (
            w_in.astype(bf16), b_in,
            rpn_w2.astype(bf16), rpn_b2,
            w_big.astype(bf16), b_big,
            rcnn_wf.astype(bf16), rcnn_ws, rcnn_wd, rcnn_b1,
            rcnn_wh.astype(bf16), rcnn_bh)

    def __call__(self, input_data):
        pts_input = input_data['pts_input']                       # (B, N, 3)
        Bq, Nq, _ = pts_input.shape
        BN = Bq * Nq

        # --- point -> pixel gather on RAW pixels (clamped, explicit int32) ----
        # The 1x1-conv PSP stand-in commutes with the gather, so only the
        # sampled pixels ever enter the kernel.
        img = input_data['img']                                   # (B, 3, H, W)
        pts_img = input_data['pts_img'].astype(jnp.int32)         # (B, N, 2)
        Hq, Wq = img.shape[2], img.shape[3]
        x_ind = jnp.clip(pts_img[:, :, 0], 0, Wq - 1)
        y_ind = jnp.clip(pts_img[:, :, 1], 0, Hq - 1)
        flat_idx = y_ind * Wq + x_ind                             # (B, N)
        img_hwc = jnp.transpose(img, (0, 2, 3, 1)).reshape(Bq, Hq * Wq, 3)
        pix = jnp.take_along_axis(img_hwc, flat_idx[:, :, None], axis=1)  # (B,N,3)

        # --- fused (BN, 8) input [x,y,z, r,g,b, 0,0] ---------------------------
        in8 = (jnp.zeros((BN, 8), jnp.float32)
               .at[:, 0:3].set(pts_input.reshape(BN, 3))
               .at[:, 3:6].set(pix.reshape(BN, 3)))

        # --- ONE fused Pallas kernel for the entire point pipeline ------------
        slab = pointrcnn_fused(in8, self._params).reshape(Bq, Nq, HEAD_PAD)

        feat = slab[:, :, 0:FEAT_C]                               # (B, N, C)
        rpn_cls = slab[:, :, RPN_CLS_COL:RPN_CLS_COL + 1]         # (B, N, 1)
        rpn_reg = slab[:, :, RPN_REG_COL:RPN_REG_COL + NUM_REG]   # (B, N, NUM_REG)
        seg_mask = slab[:, :, SEG_COL]                            # (B, N)
        backbone_xyz = pts_input

        output = {
            'rpn_cls': rpn_cls,
            'rpn_reg': rpn_reg,
            'backbone_xyz': backbone_xyz,
            'backbone_features': jnp.transpose(feat, (0, 2, 1)),  # torch (B, C, N)
            'seg_result': seg_mask,
        }

        # --- proposal layer (simplified: top-k decode, no oriented NMS) -------
        # TODO(synk): full proposal_layer box decoding + oriented NMS not implemented.
        rpn_scores_raw = slab[:, :, RPN_CLS_COL]                  # (B, N)
        roi_scores_raw, idx = jax.lax.top_k(rpn_scores_raw, K_ROIS)
        xyz_k = jnp.take_along_axis(backbone_xyz, idx[:, :, None], axis=1)
        reg_k = jnp.take_along_axis(rpn_reg, idx[:, :, None], axis=1)
        rois = jnp.concatenate(
            [xyz_k + reg_k[..., :3], jnp.abs(reg_k[..., 3:6]), reg_k[..., 6:7]],
            axis=-1)                                              # (B, K, 7)
        output['rois'] = rois
        output['roi_scores_raw'] = roi_scores_raw

        # --- RCNN head outputs (already computed inside the fused kernel) -----
        output['rcnn_cls'] = slab[:, :, RCNN_CLS_COL:RCNN_CLS_COL + self.num_classes]
        output['rcnn_reg'] = slab[:, :, RCNN_REG_COL:RCNN_REG_COL + 7]
        return output


# =================================== main =====================================
if __name__ == "__main__":
    key = jax.random.PRNGKey(0)
    k_pts, k_img, k_pix, k_par = jax.random.split(key, 4)

    pts_input = jax.random.normal(k_pts, (B, N, 3), jnp.float32)
    img = jax.random.normal(k_img, (B, 3, H, W), jnp.float32)
    pts_img = jnp.stack(
        [jax.random.randint(k_pix, (B, N), 0, W, jnp.int32),
         jax.random.randint(jax.random.fold_in(k_pix, 1), (B, N), 0, H, jnp.int32)],
        axis=-1)

    model = PointRCNN(num_classes=NUM_CLASSES, key=k_par)
    out = model({'pts_input': pts_input, 'img': img, 'pts_img': pts_img})
    out = jax.block_until_ready(out)

    # light sanity checks on shapes
    assert out['rpn_cls'].shape == (B, N, 1)
    assert out['rpn_reg'].shape == (B, N, NUM_REG)
    assert out['backbone_features'].shape == (B, FEAT_C, N)
    assert out['rois'].shape == (B, K_ROIS, 7)
    assert out['seg_result'].shape == (B, N)
    assert out['rcnn_cls'].shape == (B, N, NUM_CLASSES)
    assert out['rcnn_reg'].shape == (B, N, 7)
    print("KERNEL_OK")
</pallas_src>

<mosaic_0001>
module attributes {stable_mosaic.version = 11 : i64} {
  func.func @_pointrcnn_fused_kernel(%arg0: i32, %arg1: memref<128x8xf32, #tpu.memory_space<vmem>>, %arg2: memref<8x64xbf16, #tpu.memory_space<vmem>>, %arg3: memref<1x64xf32, #tpu.memory_space<vmem>>, %arg4: memref<32x32xbf16, #tpu.memory_space<vmem>>, %arg5: memref<1x32xf32, #tpu.memory_space<vmem>>, %arg6: memref<64x160xbf16, #tpu.memory_space<vmem>>, %arg7: memref<1x160xf32, #tpu.memory_space<vmem>>, %arg8: memref<32x32xbf16, #tpu.memory_space<vmem>>, %arg9: memref<1x32xf32, #tpu.memory_space<vmem>>, %arg10: memref<1x32xf32, #tpu.memory_space<vmem>>, %arg11: memref<1x32xf32, #tpu.memory_space<vmem>>, %arg12: memref<32x128xbf16, #tpu.memory_space<vmem>>, %arg13: memref<1x128xf32, #tpu.memory_space<vmem>>, %arg14: memref<128x128xf32, #tpu.memory_space<vmem>>) attributes {dimension_semantics = [#tpu.dimension_semantics<parallel>], iteration_bounds = array<i64: 2>, scalar_prefetch = 0 : i64, scratch_operands = 0 : i64, tpu.core_type = #tpu.core_type<tc>, window_params = [{transform_indices = @transform_0, window_bounds = array<i64: 128, 8>}, {pipeline_mode = #tpu.pipeline_mode<synchronous>, transform_indices = @transform_1, window_bounds = array<i64: 8, 64>}, {pipeline_mode = #tpu.pipeline_mode<synchronous>, transform_indices = @transform_2, window_bounds = array<i64: 1, 64>}, {pipeline_mode = #tpu.pipeline_mode<synchronous>, transform_indices = @transform_3, window_bounds = array<i64: 32, 32>}, {pipeline_mode = #tpu.pipeline_mode<synchronous>, transform_indices = @transform_4, window_bounds = array<i64: 1, 32>}, {pipeline_mode = #tpu.pipeline_mode<synchronous>, transform_indices = @transform_5, window_bounds = array<i64: 64, 160>}, {pipeline_mode = #tpu.pipeline_mode<synchronous>, transform_indices = @transform_6, window_bounds = array<i64: 1, 160>}, {pipeline_mode = #tpu.pipeline_mode<synchronous>, transform_indices = @transform_7, window_bounds = array<i64: 32, 32>}, {pipeline_mode = #tpu.pipeline_mode<synchronous>, transform_indices = @transform_8, window_bounds = array<i64: 1, 32>}, {pipeline_mode = #tpu.pipeline_mode<synchronous>, transform_indices = @transform_9, window_bounds = array<i64: 1, 32>}, {pipeline_mode = #tpu.pipeline_mode<synchronous>, transform_indices = @transform_10, window_bounds = array<i64: 1, 32>}, {pipeline_mode = #tpu.pipeline_mode<synchronous>, transform_indices = @transform_11, window_bounds = array<i64: 32, 128>}, {pipeline_mode = #tpu.pipeline_mode<synchronous>, transform_indices = @transform_12, window_bounds = array<i64: 1, 128>}, {transform_indices = @transform_13, window_bounds = array<i64: 128, 128>}]} {
    %c0 = arith.constant 0 : index
    %c0_0 = arith.constant 0 : index
    %0 = vector.load %arg1[%c0, %c0_0] : memref<128x8xf32, #tpu.memory_space<vmem>>, vector<128x8xf32>
    %1 = arith.truncf %0 : vector<128x8xf32> to vector<128x8xbf16>
    %c0_1 = arith.constant 0 : index
    %c0_2 = arith.constant 0 : index
    %2 = vector.load %arg2[%c0_1, %c0_2] : memref<8x64xbf16, #tpu.memory_space<vmem>>, vector<8x64xbf16>
    %cst = arith.constant dense<0.000000e+00> : vector<128x64xf32>
    %3 = tpu.matmul %1, %2, %cst {dimension_numbers = #tpu.dot_dimension_numbers<[1], [0], [0], [1], [0, 0, 1, 1], [], []>} : vector<128x8xbf16>, vector<8x64xbf16>, vector<128x64xf32> -> vector<128x64xf32>
    %c0_3 = arith.constant 0 : index
    %c0_4 = arith.constant 0 : index
    %4 = vector.load %arg3[%c0_3, %c0_4] : memref<1x64xf32, #tpu.memory_space<vmem>>, vector<1x64xf32>
    %5 = vector.broadcast %4 : vector<1x64xf32> to vector<128x64xf32>
    %6 = arith.addf %3, %5 : vector<128x64xf32>
    %cst_5 = arith.constant 0.000000e+00 : f32
    %7 = vector.broadcast %cst_5 : f32 to vector<128x64xf32>
    %8 = arith.maximumf %6, %7 : vector<128x64xf32>
    %9 = vector.extract_strided_slice %8 {offsets = [0, 0], sizes = [128, 32], strides = [1, 1]} : vector<128x64xf32> to vector<128x32xf32>
    %10 = vector.extract_strided_slice %8 {offsets = [0, 32], sizes = [128, 32], strides = [1, 1]} : vector<128x64xf32> to vector<128x32xf32>
    %11 = arith.truncf %9 : vector<128x32xf32> to vector<128x32xbf16>
    %c0_6 = arith.constant 0 : index
    %c0_7 = arith.constant 0 : index
    %12 = vector.load %arg4[%c0_6, %c0_7] : memref<32x32xbf16, #tpu.memory_space<vmem>>, vector<32x32xbf16>
    %cst_8 = arith.constant dense<0.000000e+00> : vector<128x32xf32>
    %13 = tpu.matmul %11, %12, %cst_8 {dimension_numbers = #tpu.dot_dimension_numbers<[1], [0], [0], [1], [0, 0, 1, 1], [], []>} : vector<128x32xbf16>, vector<32x32xbf16>, vector<128x32xf32> -> vector<128x32xf32>
    %c0_9 = arith.constant 0 : index
    %c0_10 = arith.constant 0 : index
    %14 = vector.load %arg5[%c0_9, %c0_10] : memref<1x32xf32, #tpu.memory_space<vmem>>, vector<1x32xf32>
    %15 = vector.broadcast %14 : vector<1x32xf32> to vector<128x32xf32>
    %16 = arith.addf %13, %15 : vector<128x32xf32>
    %cst_11 = arith.constant 0.000000e+00 : f32
    %17 = vector.broadcast %cst_11 : f32 to vector<128x32xf32>
    %18 = arith.maximumf %16, %17 : vector<128x32xf32>
    %19 = tpu.concatenate %18, %10 in 1 : vector<128x32xf32>, vector<128x32xf32> -> vector<128x64xf32>
    %20 = arith.truncf %19 : vector<128x64xf32> to vector<128x64xbf16>
    %c0_12 = arith.constant 0 : index
    %c0_13 = arith.constant 0 : index
    %21 = vector.load %arg6[%c0_12, %c0_13] : memref<64x160xbf16, #tpu.memory_space<vmem>>, vector<64x160xbf16>
    %cst_14 = arith.constant dense<0.000000e+00> : vector<128x160xf32>
    %22 = tpu.matmul %20, %21, %cst_14 {dimension_numbers = #tpu.dot_dimension_numbers<[1], [0], [0], [1], [0, 0, 1, 1], [], []>} : vector<128x64xbf16>, vector<64x160xbf16>, vector<128x160xf32> -> vector<128x160xf32>
    %c0_15 = arith.constant 0 : index
    %c0_16 = arith.constant 0 : index
    %23 = vector.load %arg7[%c0_15, %c0_16] : memref<1x160xf32, #tpu.memory_space<vmem>>, vector<1x160xf32>
    %24 = vector.broadcast %23 : vector<1x160xf32> to vector<128x160xf32>
    %25 = arith.addf %22, %24 : vector<128x160xf32>
    %26 = vector.extract_strided_slice %25 {offsets = [0, 0], sizes = [128, 128], strides = [1, 1]} : vector<128x160xf32> to vector<128x128xf32>
    %27 = vector.extract_strided_slice %25 {offsets = [0, 128], sizes = [128, 32], strides = [1, 1]} : vector<128x160xf32> to vector<128x32xf32>
    %cst_17 = arith.constant 0.000000e+00 : f32
    %28 = vector.broadcast %cst_17 : f32 to vector<128x32xf32>
    %29 = arith.maximumf %27, %28 : vector<128x32xf32>
    %30 = vector.extract_strided_slice %26 {offsets = [0, 32], sizes = [128, 1], strides = [1, 1]} : vector<128x128xf32> to vector<128x1xf32>
    %cst_18 = arith.constant -0.847297847 : f32
    %31 = vector.broadcast %cst_18 : f32 to vector<128x1xf32>
    %32 = arith.cmpf ogt, %30, %31 : vector<128x1xf32>
    %33 = arith.extui %32 : vector<128x1xi1> to vector<128x1xi32>
    %34 = arith.sitofp %33 : vector<128x1xi32> to vector<128x1xf32>
    %35 = vector.extract_strided_slice %0 {offsets = [0, 0], sizes = [128, 3], strides = [1, 1]} : vector<128x8xf32> to vector<128x3xf32>
    %36 = arith.mulf %35, %35 : vector<128x3xf32>
    %cst_19 = arith.constant dense<0.000000e+00> : vector<128xf32>
    %37 = vector.multi_reduction <add>, %36, %cst_19 [1] : vector<128x3xf32> to vector<128xf32>
    %38 = vector.shape_cast %37 : vector<128xf32> to vector<128x1xf32>
    %39 = math.sqrt %38 : vector<128x1xf32>
    %40 = arith.truncf %29 : vector<128x32xf32> to vector<128x32xbf16>
    %c0_20 = arith.constant 0 : index
    %c0_21 = arith.constant 0 : index
    %41 = vector.load %arg8[%c0_20, %c0_21] : memref<32x32xbf16, #tpu.memory_space<vmem>>, vector<32x32xbf16>
    %cst_22 = arith.constant dense<0.000000e+00> : vector<128x32xf32>
    %42 = tpu.matmul %40, %41, %cst_22 {dimension_numbers = #tpu.dot_dimension_numbers<[1], [0], [0], [1], [0, 0, 1, 1], [], []>} : vector<128x32xbf16>, vector<32x32xbf16>, vector<128x32xf32> -> vector<128x32xf32>
    %c0_23 = arith.constant 0 : index
    %c0_24 = arith.constant 0 : index
    %43 = vector.load %arg9[%c0_23, %c0_24] : memref<1x32xf32, #tpu.memory_space<vmem>>, vector<1x32xf32>
    %44 = vector.broadcast %34 : vector<128x1xf32> to vector<128x32xf32>
    %45 = vector.broadcast %43 : vector<1x32xf32> to vector<128x32xf32>
    %46 = arith.mulf %44, %45 : vector<128x32xf32>
    %47 = arith.addf %42, %46 : vector<128x32xf32>
    %c0_25 = arith.constant 0 : index
    %c0_26 = arith.constant 0 : index
    %48 = vector.load %arg10[%c0_25, %c0_26] : memref<1x32xf32, #tpu.memory_space<vmem>>, vector<1x32xf32>
    %49 = vector.broadcast %39 : vector<128x1xf32> to vector<128x32xf32>
    %50 = vector.broadcast %48 : vector<1x32xf32> to vector<128x32xf32>
    %51 = arith.mulf %49, %50 : vector<128x32xf32>
    %52 = arith.addf %47, %51 : vector<128x32xf32>
    %c0_27 = arith.constant 0 : index
    %c0_28 = arith.constant 0 : index
    %53 = vector.load %arg11[%c0_27, %c0_28] : memref<1x32xf32, #tpu.memory_space<vmem>>, vector<1x32xf32>
    %54 = vector.broadcast %53 : vector<1x32xf32> to vector<128x32xf32>
    %55 = arith.addf %52, %54 : vector<128x32xf32>
    %cst_29 = arith.constant 0.000000e+00 : f32
    %56 = vector.broadcast %cst_29 : f32 to vector<128x32xf32>
    %57 = arith.maximumf %55, %56 : vector<128x32xf32>
    %58 = arith.truncf %57 : vector<128x32xf32> to vector<128x32xbf16>
    %c0_30 = arith.constant 0 : index
    %c0_31 = arith.constant 0 : index
    %59 = vector.load %arg12[%c0_30, %c0_31] : memref<32x128xbf16, #tpu.memory_space<vmem>>, vector<32x128xbf16>
    %cst_32 = arith.constant dense<0.000000e+00> : vector<128x128xf32>
    %60 = tpu.matmul %58, %59, %cst_32 {dimension_numbers = #tpu.dot_dimension_numbers<[1], [0], [0], [1], [0, 0, 1, 1], [], []>} : vector<128x32xbf16>, vector<32x128xbf16>, vector<128x128xf32> -> vector<128x128xf32>
    %c0_33 = arith.constant 0 : index
    %c0_34 = arith.constant 0 : index
    %61 = vector.load %arg13[%c0_33, %c0_34] : memref<1x128xf32, #tpu.memory_space<vmem>>, vector<1x128xf32>
    %62 = vector.broadcast %61 : vector<1x128xf32> to vector<128x128xf32>
    %63 = arith.addf %60, %62 : vector<128x128xf32>
    %64 = arith.addf %26, %63 : vector<128x128xf32>
    %c0_35 = arith.constant 0 : index
    %c0_36 = arith.constant 0 : index
    %65 = vector.load %arg14[%c0_35, %c0_36] : memref<128x128xf32, #tpu.memory_space<vmem>>, vector<128x128xf32>
    tpu.vector_store %arg14[%c0_35, %c0_36], %64 {strides = array<i32>} : memref<128x128xf32, #tpu.memory_space<vmem>>, vector<128x128xf32>,
    %c0_37 = arith.constant 0 : index
    %c0_38 = arith.constant 0 : index
    %66 = vector.load %arg14[%c0_37, %c0_38] : memref<128x128xf32, #tpu.memory_space<vmem>>, vector<128x32xf32>
    tpu.vector_store %arg14[%c0_37, %c0_38], %18 {strides = array<i32>} : memref<128x128xf32, #tpu.memory_space<vmem>>, vector<128x32xf32>,
    %c0_39 = arith.constant 0 : index
    %c41 = arith.constant 41 : index
    %67 = vector.load %arg14[%c0_39, %c41] : memref<128x128xf32, #tpu.memory_space<vmem>>, vector<128x1xf32>
    tpu.vector_store %arg14[%c0_39, %c41], %34 {strides = array<i32>} : memref<128x128xf32, #tpu.memory_space<vmem>>, vector<128x1xf32>,
    return
  }
  func.func @transform_0(%arg0: i32) -> (i32, i32) {
    %c0_i32 = arith.constant 0 : i32
    %c0_i32_0 = arith.constant 0 : i32
    return %arg0, %c0_i32 : i32, i32
  }
  func.func @transform_1(%arg0: i32) -> (i32, i32) {
    %c0_i32 = arith.constant 0 : i32
    %c0_i32_0 = arith.constant 0 : i32
    %c0_i32_1 = arith.constant 0 : i32
    return %c0_i32, %c0_i32_0 : i32, i32
  }
  func.func @transform_2(%arg0: i32) -> (i32, i32) {
    %c0_i32 = arith.constant 0 : i32
    %c0_i32_0 = arith.constant 0 : i32
    %c0_i32_1 = arith.constant 0 : i32
    return %c0_i32, %c0_i32_0 : i32, i32
  }
  func.func @transform_3(%arg0: i32) -> (i32, i32) {
    %c0_i32 = arith.constant 0 : i32
    %c0_i32_0 = arith.constant 0 : i32
    %c0_i32_1 = arith.constant 0 : i32
    return %c0_i32, %c0_i32_0 : i32, i32
  }
  func.func @transform_4(%arg0: i32) -> (i32, i32) {
    %c0_i32 = arith.constant 0 : i32
    %c0_i32_0 = arith.constant 0 : i32
    %c0_i32_1 = arith.constant 0 : i32
    return %c0_i32, %c0_i32_0 : i32, i32
  }
  func.func @transform_5(%arg0: i32) -> (i32, i32) {
    %c0_i32 = arith.constant 0 : i32
    %c0_i32_0 = arith.constant 0 : i32
    %c0_i32_1 = arith.constant 0 : i32
    return %c0_i32, %c0_i32_0 : i32, i32
  }
  func.func @transform_6(%arg0: i32) -> (i32, i32) {
    %c0_i32 = arith.constant 0 : i32
    %c0_i32_0 = arith.constant 0 : i32
    %c0_i32_1 = arith.constant 0 : i32
    return %c0_i32, %c0_i32_0 : i32, i32
  }
  func.func @transform_7(%arg0: i32) -> (i32, i32) {
    %c0_i32 = arith.constant 0 : i32
    %c0_i32_0 = arith.constant 0 : i32
    %c0_i32_1 = arith.constant 0 : i32
    return %c0_i32, %c0_i32_0 : i32, i32
  }
  func.func @transform_8(%arg0: i32) -> (i32, i32) {
    %c0_i32 = arith.constant 0 : i32
    %c0_i32_0 = arith.constant 0 : i32
    %c0_i32_1 = arith.constant 0 : i32
    return %c0_i32, %c0_i32_0 : i32, i32
  }
  func.func @transform_9(%arg0: i32) -> (i32, i32) {
    %c0_i32 = arith.constant 0 : i32
    %c0_i32_0 = arith.constant 0 : i32
    %c0_i32_1 = arith.constant 0 : i32
    return %c0_i32, %c0_i32_0 : i32, i32
  }
  func.func @transform_10(%arg0: i32) -> (i32, i32) {
    %c0_i32 = arith.constant 0 : i32
    %c0_i32_0 = arith.constant 0 : i32
    %c0_i32_1 = arith.constant 0 : i32
    return %c0_i32, %c0_i32_0 : i32, i32
  }
  func.func @transform_11(%arg0: i32) -> (i32, i32) {
    %c0_i32 = arith.constant 0 : i32
    %c0_i32_0 = arith.constant 0 : i32
    %c0_i32_1 = arith.constant 0 : i32
    return %c0_i32, %c0_i32_0 : i32, i32
  }
  func.func @transform_12(%arg0: i32) -> (i32, i32) {
    %c0_i32 = arith.constant 0 : i32
    %c0_i32_0 = arith.constant 0 : i32
    %c0_i32_1 = arith.constant 0 : i32
    return %c0_i32, %c0_i32_0 : i32, i32
  }
  func.func @transform_13(%arg0: i32) -> (i32, i32) {
    %c0_i32 = arith.constant 0 : i32
    %c0_i32_0 = arith.constant 0 : i32
    return %arg0, %c0_i32 : i32, i32
  }
}

</mosaic_0001>

<llo_original>
// kernel: tpu_custom_call.1
$region0: #{tpu_custom_call.1}
  #allocation0 [shape = 'u32[]', space=smem, size = 0x4, offset = 0x4, fixed_abs, tag = 'smem constant byte address 0x4 - core index']
  #allocation1 [shape = 'u32[144,128]{1,0:T(1,128)}', space=vmem, size = 0x12000, scoped, tag = 'internal scratch']
  %s0 = inlined_call_operand.vmem [shape: f32[256,8], index: 0, kind: input, shape index: {}]
  %s1 = inlined_call_operand.vmem [shape: bf16[8,64], index: 1, kind: input, shape index: {}]
  %s2 = inlined_call_operand.vmem [shape: f32[1,64], index: 2, kind: input, shape index: {}]
  %s3 = inlined_call_operand.vmem [shape: bf16[32,32], index: 3, kind: input, shape index: {}]
  %s4 = inlined_call_operand.vmem [shape: f32[1,32], index: 4, kind: input, shape index: {}]
  %s5 = inlined_call_operand.vmem [shape: bf16[64,160], index: 5, kind: input, shape index: {}]
  %s6 = inlined_call_operand.vmem [shape: f32[1,160], index: 6, kind: input, shape index: {}]
  %s7 = inlined_call_operand.vmem [shape: bf16[32,32], index: 7, kind: input, shape index: {}]
  %s8 = inlined_call_operand.vmem [shape: f32[1,32], index: 8, kind: input, shape index: {}]
  %s9 = inlined_call_operand.vmem [shape: f32[1,32], index: 9, kind: input, shape index: {}]
  %s10 = inlined_call_operand.vmem [shape: f32[1,32], index: 10, kind: input, shape index: {}]
  %s11 = inlined_call_operand.vmem [shape: bf16[32,128], index: 11, kind: input, shape index: {}]
  %s12 = inlined_call_operand.vmem [shape: f32[1,128], index: 12, kind: input, shape index: {}]
  %s13 = inlined_call_operand.hbm [shape: f32[256,128], index: 13, kind: output, shape index: {}]
  %s14 = sld [smem:[#allocation0]]
  $region85: #{tpu_custom_call.1} parent=0
    _
  %s16 = ssub.s32 1, %s14
  %s17 = scalar_select 0, %s16, %s14
  $region1: #{tpu_custom_call.1} parent=0
    #allocation2 [shape = 'u8[131072]{0}', space=vmem, size = 0x20000, scoped, tag = 'output window, operand 0']
    #allocation3 [shape = 's32[2]{0}', space=sflag, size = 0x8, scoped, tag = 'scoped memory for tpu_custom_call.1']
    %18 = vsyncpa [#allocation3], 0
    %s19 = scalar_lea.sflag [#allocation3], 1
    %20 = vsyncpa %s19, 0
    loop: start=0, step=1, limit=4
    $region2: #{tpu_custom_call.1} parent=1 // loop_pre_header
      _
    $region3: #{tpu_custom_call.1} parent=1 // loop_header
      %s22 = sphi 0, %s26
      %p23 = scmp.ge.s32.totalorder %s22, 4
      %s32 = sphi 0, %s34
      %s35 = sphi 0, %s32
      %s36 = sphi 0, %s35
      %s52 = sphi 0, %s36
      %s56 = sphi 0, %s56
      %s58 = sphi 0, %s56
      %s59 = sphi 0, %s58
      %s73 = sphi 0, %s59
      %s77 = sphi 0, %s77
      %s79 = sphi 0, %s77
      %s80 = sphi 0, %s79
      %s94 = sphi 0, %s80
      %s98 = sphi 0, %s98
      %s100 = sphi 0, %s98
      %s101 = sphi 0, %s100
      %s115 = sphi 0, %s101
      %s119 = sphi 0, %s119
      %s121 = sphi 0, %s119
      %s122 = sphi 0, %s121
      %s136 = sphi 0, %s122
      %s140 = sphi 0, %s140
      %s142 = sphi 0, %s140
      %s143 = sphi 0, %s142
      %s157 = sphi 0, %s143
      %s161 = sphi 0, %s161
      %s163 = sphi 0, %s161
      %s164 = sphi 0, %s163
      %s178 = sphi 0, %s164
      %s182 = sphi 0, %s182
      %s184 = sphi 0, %s182
      %s185 = sphi 0, %s184
      %s199 = sphi 0, %s185
      %s203 = sphi 0, %s203
      %s205 = sphi 0, %s203
      %s206 = sphi 0, %s205
      %s220 = sphi 0, %s206
      %s224 = sphi 0, %s224
      %s226 = sphi 0, %s224
      %s227 = sphi 0, %s226
      %s241 = sphi 0, %s227
      %s245 = sphi 0, %s245
      %s247 = sphi 0, %s245
      %s248 = sphi 0, %s247
      %s262 = sphi 0, %s248
      %s266 = sphi 0, %s266
      %s268 = sphi 0, %s266
      %s269 = sphi 0, %s268
      %s283 = sphi 0, %s269
      %s287 = sphi 0, %s287
      %s289 = sphi 0, %s287
      %s290 = sphi 0, %s289
      %s304 = sphi 0, %s290
      %s310 = sphi 0, %s312
      %s313 = sphi 0, %s310
      %s314 = sphi 0, %s313
      %s330 = sphi 0, %s314
    $region4: #{tpu_custom_call.1} parent=1 // loop_header_branch
      %25 = sbr.rel (%p23) target = $region8
    $region5: #{tpu_custom_call.1} parent=1 // loop_body
      %s27 = ssub.s32 %s22, 1
      %s28 = ssub.s32 %s22, 2
      %s29 = sadd.s32 %s22, 1
      %s30 = ssub.s32 %s22, %s29
      %p31 = scmp.eq.s32.totalorder %s30, 0
      %s33 = sadd.s32 %s32, 1
      %s34 = scalar_select %p31, %s32, %s33
      %p37 = pneg %p31
      %p38 = scmp.eq.s32.totalorder %s22, 1
      %p39 = por %p37, %p38
      %p40 = scmp.ne.s32.totalorder %s32, %s35
      %p41 = scmp.eq.s32.totalorder %s22, 0
      %p42 = por %p40, %p41
      %p43 = scmp.ne.s32.totalorder %s32, %s35
      %p44 = scmp.eq.s32.totalorder %s27, 1
      %p45 = por %p43, %p44
      %p46 = scmp.ne.s32.totalorder %s35, %s36
      %p47 = scmp.eq.s32.totalorder %s27, 0
      %p48 = por %p46, %p47
      %p49 = scmp.ne.s32.totalorder %s35, %s36
      %p50 = scmp.eq.s32.totalorder %s28, 1
      %p51 = por %p49, %p50
      %p53 = scmp.ne.s32.totalorder %s36, %s52
      %p54 = scmp.eq.s32.totalorder %s28, 0
      %p55 = por %p53, %p54
      %s57 = sadd.s32 %s56, 1
      %p60 = scmp.eq.s32.totalorder %s22, 1
      %p61 = scmp.ne.s32.totalorder %s56, %s58
      %p62 = scmp.eq.s32.totalorder %s22, 0
      %p63 = por %p61, %p62
      %p64 = scmp.ne.s32.totalorder %s56, %s58
      %p65 = scmp.eq.s32.totalorder %s27, 1
      %p66 = por %p64, %p65
      %p67 = scmp.ne.s32.totalorder %s58, %s59
      %p68 = scmp.eq.s32.totalorder %s27, 0
      %p69 = por %p67, %p68
      %p70 = scmp.ne.s32.totalorder %s58, %s59
      %p71 = scmp.eq.s32.totalorder %s28, 1
      %p72 = por %p70, %p71
      %p74 = scmp.ne.s32.totalorder %s59, %s73
      %p75 = scmp.eq.s32.totalorder %s28, 0
      %p76 = por %p74, %p75
      %s78 = sadd.s32 %s77, 1
      %p81 = scmp.eq.s32.totalorder %s22, 1
      %p82 = scmp.ne.s32.totalorder %s77, %s79
      %p83 = scmp.eq.s32.totalorder %s22, 0
      %p84 = por %p82, %p83
      %p85 = scmp.ne.s32.totalorder %s77, %s79
      %p86 = scmp.eq.s32.totalorder %s27, 1
      %p87 = por %p85, %p86
      %p88 = scmp.ne.s32.totalorder %s79, %s80
      %p89 = scmp.eq.s32.totalorder %s27, 0
      %p90 = por %p88, %p89
      %p91 = scmp.ne.s32.totalorder %s79, %s80
      %p92 = scmp.eq.s32.totalorder %s28, 1
      %p93 = por %p91, %p92
      %p95 = scmp.ne.s32.totalorder %s80, %s94
      %p96 = scmp.eq.s32.totalorder %s28, 0
      %p97 = por %p95, %p96
      %s99 = sadd.s32 %s98, 1
      %p102 = scmp.eq.s32.totalorder %s22, 1
      %p103 = scmp.ne.s32.totalorder %s98, %s100
      %p104 = scmp.eq.s32.totalorder %s22, 0
      %p105 = por %p103, %p104
      %p106 = scmp.ne.s32.totalorder %s98, %s100
      %p107 = scmp.eq.s32.totalorder %s27, 1
      %p108 = por %p106, %p107
      %p109 = scmp.ne.s32.totalorder %s100, %s101
      %p110 = scmp.eq.s32.totalorder %s27, 0
      %p111 = por %p109, %p110
      %p112 = scmp.ne.s32.totalorder %s100, %s101
      %p113 = scmp.eq.s32.totalorder %s28, 1
      %p114 = por %p112, %p113
      %p116 = scmp.ne.s32.totalorder %s101, %s115
      %p117 = scmp.eq.s32.totalorder %s28, 0
      %p118 = por %p116, %p117
      %s120 = sadd.s32 %s119, 1
      %p123 = scmp.eq.s32.totalorder %s22, 1
      %p124 = scmp.ne.s32.totalorder %s119, %s121
      %p125 = scmp.eq.s32.totalorder %s22, 0
      %p126 = por %p124, %p125
      %p127 = scmp.ne.s32.totalorder %s119, %s121
      %p128 = scmp.eq.s32.totalorder %s27, 1
      %p129 = por %p127, %p128
      %p130 = scmp.ne.s32.totalorder %s121, %s122
      %p131 = scmp.eq.s32.totalorder %s27, 0
      %p132 = por %p130, %p131
      %p133 = scmp.ne.s32.totalorder %s121, %s122
      %p134 = scmp.eq.s32.totalorder %s28, 1
      %p135 = por %p133, %p134
      %p137 = scmp.ne.s32.totalorder %s122, %s136
      %p138 = scmp.eq.s32.totalorder %s28, 0
      %p139 = por %p137, %p138
      %s141 = sadd.s32 %s140, 1
      %p144 = scmp.eq.s32.totalorder %s22, 1
      %p145 = scmp.ne.s32.totalorder %s140, %s142
      %p146 = scmp.eq.s32.totalorder %s22, 0
      %p147 = por %p145, %p146
      %p148 = scmp.ne.s32.totalorder %s140, %s142
      %p149 = scmp.eq.s32.totalorder %s27, 1
      %p150 = por %p148, %p149
      %p151 = scmp.ne.s32.totalorder %s142, %s143
      %p152 = scmp.eq.s32.totalorder %s27, 0
      %p153 = por %p151, %p152
      %p154 = scmp.ne.s32.totalorder %s142, %s143
      %p155 = scmp.eq.s32.totalorder %s28, 1
      %p156 = por %p154, %p155
      %p158 = scmp.ne.s32.totalorder %s143, %s157
      %p159 = scmp.eq.s32.totalorder %s28, 0
      %p160 = por %p158, %p159
      %s162 = sadd.s32 %s161, 1
      %p165 = scmp.eq.s32.totalorder %s22, 1
      %p166 = scmp.ne.s32.totalorder %s161, %s163
      %p167 = scmp.eq.s32.totalorder %s22, 0
      %p168 = por %p166, %p167
      %p169 = scmp.ne.s32.totalorder %s161, %s163
      %p170 = scmp.eq.s32.totalorder %s27, 1
      %p171 = por %p169, %p170
      %p172 = scmp.ne.s32.totalorder %s163, %s164
      %p173 = scmp.eq.s32.totalorder %s27, 0
      %p174 = por %p172, %p173
      %p175 = scmp.ne.s32.totalorder %s163, %s164
      %p176 = scmp.eq.s32.totalorder %s28, 1
      %p177 = por %p175, %p176
      %p179 = scmp.ne.s32.totalorder %s164, %s178
      %p180 = scmp.eq.s32.totalorder %s28, 0
      %p181 = por %p179, %p180
      %s183 = sadd.s32 %s182, 1
      %p186 = scmp.eq.s32.totalorder %s22, 1
      %p187 = scmp.ne.s32.totalorder %s182, %s184
      %p188 = scmp.eq.s32.totalorder %s22, 0
      %p189 = por %p187, %p188
      %p190 = scmp.ne.s32.totalorder %s182, %s184
      %p191 = scmp.eq.s32.totalorder %s27, 1
      %p192 = por %p190, %p191
      %p193 = scmp.ne.s32.totalorder %s184, %s185
      %p194 = scmp.eq.s32.totalorder %s27, 0
      %p195 = por %p193, %p194
      %p196 = scmp.ne.s32.totalorder %s184, %s185
      %p197 = scmp.eq.s32.totalorder %s28, 1
      %p198 = por %p196, %p197
      %p200 = scmp.ne.s32.totalorder %s185, %s199
      %p201 = scmp.eq.s32.totalorder %s28, 0
      %p202 = por %p200, %p201
      %s204 = sadd.s32 %s203, 1
      %p207 = scmp.eq.s32.totalorder %s22, 1
      %p208 = scmp.ne.s32.totalorder %s203, %s205
      %p209 = scmp.eq.s32.totalorder %s22, 0
      %p210 = por %p208, %p209
      %p211 = scmp.ne.s32.totalorder %s203, %s205
      %p212 = scmp.eq.s32.totalorder %s27, 1
      %p213 = por %p211, %p212
      %p214 = scmp.ne.s32.totalorder %s205, %s206
      %p215 = scmp.eq.s32.totalorder %s27, 0
      %p216 = por %p214, %p215
      %p217 = scmp.ne.s32.totalorder %s205, %s206
      %p218 = scmp.eq.s32.totalorder %s28, 1
      %p219 = por %p217, %p218
      %p221 = scmp.ne.s32.totalorder %s206, %s220
      %p222 = scmp.eq.s32.totalorder %s28, 0
      %p223 = por %p221, %p222
      %s225 = sadd.s32 %s224, 1
      %p228 = scmp.eq.s32.totalorder %s22, 1
      %p229 = scmp.ne.s32.totalorder %s224, %s226
      %p230 = scmp.eq.s32.totalorder %s22, 0
      %p231 = por %p229, %p230
      %p232 = scmp.ne.s32.totalorder %s224, %s226
      %p233 = scmp.eq.s32.totalorder %s27, 1
      %p234 = por %p232, %p233
      %p235 = scmp.ne.s32.totalorder %s226, %s227
      %p236 = scmp.eq.s32.totalorder %s27, 0
      %p237 = por %p235, %p236
      %p238 = scmp.ne.s32.totalorder %s226, %s227
      %p239 = scmp.eq.s32.totalorder %s28, 1
      %p240 = por %p238, %p239
      %p242 = scmp.ne.s32.totalorder %s227, %s241
      %p243 = scmp.eq.s32.totalorder %s28, 0
      %p244 = por %p242, %p243
      %s246 = sadd.s32 %s245, 1
      %p249 = scmp.eq.s32.totalorder %s22, 1
      %p250 = scmp.ne.s32.totalorder %s245, %s247
      %p251 = scmp.eq.s32.totalorder %s22, 0
      %p252 = por %p250, %p251
      %p253 = scmp.ne.s32.totalorder %s245, %s247
      %p254 = scmp.eq.s32.totalorder %s27, 1
      %p255 = por %p253, %p254
      %p256 = scmp.ne.s32.totalorder %s247, %s248
      %p257 = scmp.eq.s32.totalorder %s27, 0
      %p258 = por %p256, %p257
      %p259 = scmp.ne.s32.totalorder %s247, %s248
      %p260 = scmp.eq.s32.totalorder %s28, 1
      %p261 = por %p259, %p260
      %p263 = scmp.ne.s32.totalorder %s248, %s262
      %p264 = scmp.eq.s32.totalorder %s28, 0
      %p265 = por %p263, %p264
      %s267 = sadd.s32 %s266, 1
      %p270 = scmp.eq.s32.totalorder %s22, 1
      %p271 = scmp.ne.s32.totalorder %s266, %s268
      %p272 = scmp.eq.s32.totalorder %s22, 0
      %p273 = por %p271, %p272
      %p274 = scmp.ne.s32.totalorder %s266, %s268
      %p275 = scmp.eq.s32.totalorder %s27, 1
      %p276 = por %p274, %p275
      %p277 = scmp.ne.s32.totalorder %s268, %s269
      %p278 = scmp.eq.s32.totalorder %s27, 0
      %p279 = por %p277, %p278
      %p280 = scmp.ne.s32.totalorder %s268, %s269
      %p281 = scmp.eq.s32.totalorder %s28, 1
      %p282 = por %p280, %p281
      %p284 = scmp.ne.s32.totalorder %s269, %s283
      %p285 = scmp.eq.s32.totalorder %s28, 0
      %p286 = por %p284, %p285
      %s288 = sadd.s32 %s287, 1
      %p291 = scmp.eq.s32.totalorder %s22, 1
      %p292 = scmp.ne.s32.totalorder %s287, %s289
      %p293 = scmp.eq.s32.totalorder %s22, 0
      %p294 = por %p292, %p293
      %p295 = scmp.ne.s32.totalorder %s287, %s289
      %p296 = scmp.eq.s32.totalorder %s27, 1
      %p297 = por %p295, %p296
      %p298 = scmp.ne.s32.totalorder %s289, %s290
      %p299 = scmp.eq.s32.totalorder %s27, 0
      %p300 = por %p298, %p299
      %p301 = scmp.ne.s32.totalorder %s289, %s290
      %p302 = scmp.eq.s32.totalorder %s28, 1
      %p303 = por %p301, %p302
      %p305 = scmp.ne.s32.totalorder %s290, %s304
      %p306 = scmp.eq.s32.totalorder %s28, 0
      %p307 = por %p305, %p306
      %s308 = ssub.s32 %s22, %s29
      %p309 = scmp.eq.s32.totalorder %s308, 0
      %s311 = sadd.s32 %s310, 1
      %s312 = scalar_select %p309, %s310, %s311
      %p315 = pneg %p309
      %p316 = scmp.eq.s32.totalorder %s22, 1
      %p317 = por %p315, %p316
      %p318 = scmp.ne.s32.totalorder %s310, %s313
      %p319 = scmp.eq.s32.totalorder %s22, 0
      %p320 = por %p318, %p319
      %p321 = scmp.ne.s32.totalorder %s310, %s313
      %p322 = scmp.eq.s32.totalorder %s27, 1
      %p323 = por %p321, %p322
      %p324 = scmp.ne.s32.totalorder %s313, %s314
      %p325 = scmp.eq.s32.totalorder %s27, 0
      %p326 = por %p324, %p325
      %p327 = scmp.ne.s32.totalorder %s313, %s314
      %p328 = scmp.eq.s32.totalorder %s28, 1
      %p329 = por %p327, %p328
      %p331 = scmp.ne.s32.totalorder %s314, %s330
      %p332 = scmp.eq.s32.totalorder %s28, 0
      %p333 = por %p331, %p332
      %p334 = scmp.le.s32.totalorder 1, %s22
      %p335 = scmp.lt.s32.totalorder %s22, 3
      %p336 = pnand %p334, %p335
      %p337 = pneg %p336
      // Predicated region
      $region9: #{tpu_custom_call.1} parent=5 // pred_check
        _
      $region10: #{tpu_custom_call.1} parent=5 // pred_check_branch
        %339 = sbr.rel (%p336) target = $region12
      $region11: #{tpu_custom_call.1} parent=5 // pred_region
        %s340 = ssub.s32 %s22, 1
        // Predicated region
        $region13: #{tpu_custom_call.1} parent=11 // pred_check
          %p341 = pneg %p69
        $region14: #{tpu_custom_call.1} parent=11 // pred_check_branch
          %343 = sbr.rel (%p341) target = $region16
        $region15: #{tpu_custom_call.1} parent=11 // pred_region
          _
        $region16: #{tpu_custom_call.1} parent=11 // pred_fallthru
          _
        // Predicated region
        $region17: #{tpu_custom_call.1} parent=11 // pred_check
          %p344 = pneg %p90
        $region18: #{tpu_custom_call.1} parent=11 // pred_check_branch
          %346 = sbr.rel (%p344) target = $region20
        $region19: #{tpu_custom_call.1} parent=11 // pred_region
          _
        $region20: #{tpu_custom_call.1} parent=11 // pred_fallthru
          _
        // Predicated region
        $region21: #{tpu_custom_call.1} parent=11 // pred_check
          %p347 = pneg %p111
        $region22: #{tpu_custom_call.1} parent=11 // pred_check_branch
          %349 = sbr.rel (%p347) target = $region24
        $region23: #{tpu_custom_call.1} parent=11 // pred_region
          _
        $region24: #{tpu_custom_call.1} parent=11 // pred_fallthru
          _
        // Predicated region
        $region25: #{tpu_custom_call.1} parent=11 // pred_check
          %p350 = pneg %p132
        $region26: #{tpu_custom_call.1} parent=11 // pred_check_branch
          %352 = sbr.rel (%p350) target = $region28
        $region27: #{tpu_custom_call.1} parent=11 // pred_region
          _
        $region28: #{tpu_custom_call.1} parent=11 // pred_fallthru
          _
        // Predicated region
        $region29: #{tpu_custom_call.1} parent=11 // pred_check
          %p353 = pneg %p153
        $region30: #{tpu_custom_call.1} parent=11 // pred_check_branch
          %355 = sbr.rel (%p353) target = $region32
        $region31: #{tpu_custom_call.1} parent=11 // pred_region
          _
        $region32: #{tpu_custom_call.1} parent=11 // pred_fallthru
          _
        // Predicated region
        $region33: #{tpu_custom_call.1} parent=11 // pred_check
          %p356 = pneg %p174
        $region34: #{tpu_custom_call.1} parent=11 // pred_check_branch
          %358 = sbr.rel (%p356) target = $region36
        $region35: #{tpu_custom_call.1} parent=11 // pred_region
          _
        $region36: #{tpu_custom_call.1} parent=11 // pred_fallthru
          _
        // Predicated region
        $region37: #{tpu_custom_call.1} parent=11 // pred_check
          %p359 = pneg %p195
        $region38: #{tpu_custom_call.1} parent=11 // pred_check_branch
          %361 = sbr.rel (%p359) target = $region40
        $region39: #{tpu_custom_call.1} parent=11 // pred_region
          _
        $region40: #{tpu_custom_call.1} parent=11 // pred_fallthru
          _
        // Predicated region
        $region41: #{tpu_custom_call.1} parent=11 // pred_check
          %p362 = pneg %p216
        $region42: #{tpu_custom_call.1} parent=11 // pred_check_branch
          %364 = sbr.rel (%p362) target = $region44
        $region43: #{tpu_custom_call.1} parent=11 // pred_region
          _
        $region44: #{tpu_custom_call.1} parent=11 // pred_fallthru
          _
        // Predicated region
        $region45: #{tpu_custom_call.1} parent=11 // pred_check
          %p365 = pneg %p237
        $region46: #{tpu_custom_call.1} parent=11 // pred_check_branch
          %367 = sbr.rel (%p365) target = $region48
        $region47: #{tpu_custom_call.1} parent=11 // pred_region
          _
        $region48: #{tpu_custom_call.1} parent=11 // pred_fallthru
          _
        // Predicated region
        $region49: #{tpu_custom_call.1} parent=11 // pred_check
          %p368 = pneg %p258
        $region50: #{tpu_custom_call.1} parent=11 // pred_check_branch
          %370 = sbr.rel (%p368) target = $region52
        $region51: #{tpu_custom_call.1} parent=11 // pred_region
          _
        $region52: #{tpu_custom_call.1} parent=11 // pred_fallthru
          _
        // Predicated region
        $region53: #{tpu_custom_call.1} parent=11 // pred_check
          %p371 = pneg %p279
        $region54: #{tpu_custom_call.1} parent=11 // pred_check_branch
          %373 = sbr.rel (%p371) target = $region56
        $region55: #{tpu_custom_call.1} parent=11 // pred_region
          _
        $region56: #{tpu_custom_call.1} parent=11 // pred_fallthru
          _
        // Predicated region
        $region57: #{tpu_custom_call.1} parent=11 // pred_check
          %p374 = pneg %p300
        $region58: #{tpu_custom_call.1} parent=11 // pred_check_branch
          %376 = sbr.rel (%p374) target = $region60
        $region59: #{tpu_custom_call.1} parent=11 // pred_region
          _
        $region60: #{tpu_custom_call.1} parent=11 // pred_fallthru
          _
      $region12: #{tpu_custom_call.1} parent=5 // pred_fallthru
        _
      %p377 = scmp.lt.s32.totalorder %s22, 2
      // Predicated region
      $region61: #{tpu_custom_call.1} parent=5 // pred_check
        %p378 = pneg %p377
      $region62: #{tpu_custom_call.1} parent=5 // pred_check_branch
        %380 = sbr.rel (%p378) target = $region64
      $region63: #{tpu_custom_call.1} parent=5 // pred_region
        // Predicated region
        $region65: #{tpu_custom_call.1} parent=63 // pred_check
          %p381 = pneg %p42
        $region66: #{tpu_custom_call.1} parent=63 // pred_check_branch
          %383 = sbr.rel (%p381) target = $region68
        $region67: #{tpu_custom_call.1} parent=63 // pred_region
          %s384 = smul.u32 16, %s22
          %p385 = scmp.lt.s32.totalorder %s384, 31
          %s386 = scalar_select %p385, %s384, 31
          %s387 = smul.addr %s386, 8
          %s388 = scalar_lea.vmem %s0, %s387
          %s389 = smul.u32 16, %s22
        $region68: #{tpu_custom_call.1} parent=63 // pred_fallthru
          _
      $region64: #{tpu_custom_call.1} parent=5 // pred_fallthru
        _
      %p390 = scmp.le.s32.totalorder 1, %s22
      %p391 = scmp.lt.s32.totalorder %s22, 3
      %p392 = pnand %p390, %p391
      %p393 = pneg %p392
      // Predicated region
      $region69: #{tpu_custom_call.1} parent=5 // pred_check
        _
      $region70: #{tpu_custom_call.1} parent=5 // pred_check_branch
        %395 = sbr.rel (%p392) target = $region72
      $region71: #{tpu_custom_call.1} parent=5 // pred_region
        %s396 = ssub.s32 %s22, 1
        %s397 = smul.u32 16, %s27
        %p398 = scmp.lt.s32.totalorder %s397, 31
        %s399 = scalar_select %p398, %s397, 31
        %s400 = smul.addr %s399, 8
        %s401 = scalar_lea.vmem %s0, %s400
        %p402 = pneg %p48
        %p403 = pneg %p45
        %p404 = pneg %p69
        %p405 = pneg %p66
        %p406 = pneg %p90
        %p407 = pneg %p87
        %p408 = pneg %p111
        %p409 = pneg %p108
        %p410 = pneg %p132
        %p411 = pneg %p129
        %p412 = pneg %p153
        %p413 = pneg %p150
        %p414 = pneg %p174
        %p415 = pneg %p171
        %p416 = pneg %p195
        %p417 = pneg %p192
        %p418 = pneg %p216
        %p419 = pneg %p213
        %p420 = pneg %p237
        %p421 = pneg %p234
        %p422 = pneg %p258
        %p423 = pneg %p255
        %p424 = pneg %p279
        %p425 = pneg %p276
        %p426 = pneg %p300
        %p427 = pneg %p297
        %p428 = pneg %p326
        %p429 = pneg %p323
        %s430 = sand.u32 %s313, 1
        %s431 = scalar_lea.sflag [#allocation3], %s430
        %s432 = sand.u32 %s313, 1
        %s433 = smul.addr %s432, 128
        %s434 = scalar_lea.vmem [#allocation2], %s433
        %s435 = smul.u32 16, %s27
        %p436 = scmp.lt.s32.totalorder %s435, 31
        %s437 = scalar_select %p436, %s435, 31
        %s438 = smul.addr %s437, 8
        %s439 = scalar_lea.vmem %s0, %s438
        %s440 = smul.u32 16, %s27
        %s441 = smul.u32 16, %s27
        %v443 = vld [vmem:[%s439] sm:$0xff]
        %v444 = vld [vmem:[%s439 + $0x8] sm:$0xff]
        %v445 = vld [vmem:[%s439 + $0x10] sm:$0xff]
        %v446 = vld [vmem:[%s439 + $0x18] sm:$0xff]
        %v447 = vld [vmem:[%s439 + $0x20] sm:$0xff]
        %v448 = vld [vmem:[%s439 + $0x28] sm:$0xff]
        %v449 = vld [vmem:[%s439 + $0x30] sm:$0xff]
        %v450 = vld [vmem:[%s439 + $0x38] sm:$0xff]
        %v451 = vld [vmem:[%s439 + $0x40] sm:$0xff]
        %v452 = vld [vmem:[%s439 + $0x48] sm:$0xff]
        %v453 = vld [vmem:[%s439 + $0x50] sm:$0xff]
        %v454 = vld [vmem:[%s439 + $0x58] sm:$0xff]
        %v455 = vld [vmem:[%s439 + $0x60] sm:$0xff]
        %v456 = vld [vmem:[%s439 + $0x68] sm:$0xff]
        %v457 = vld [vmem:[%s439 + $0x70] sm:$0xff]
        %v458 = vld [vmem:[%s439 + $0x78] sm:$0xff]
        %v459 = vpack.c.bf16 %v444, %v443
        %v460 = vpack.c.bf16 %v446, %v445
        %v461 = vpack.c.bf16 %v448, %v447
        %v462 = vpack.c.bf16 %v450, %v449
        %v463 = vpack.c.bf16 %v452, %v451
        %v464 = vpack.c.bf16 %v454, %v453
        %v465 = vpack.c.bf16 %v456, %v455
        %v466 = vpack.c.bf16 %v458, %v457
        %v467 = vld [vmem:[%s1] sm:$0xf]
        %v468 = vld [vmem:[%s2] sm:$0x1]
        %v470 = vlaneseq
        %v471 = vshrl.u32 %v470, 7
        %v472 = vsub.s32 0, %v471
        %v473 = vrot.slane %v468, %v472
        %vm475 = vcmask 64512
        %v477 = vsel %vm475, %v459, 0
        %v480 = vsel %vm475, %v460, 0
        %v483 = vsel %vm475, %v461, 0
        %v486 = vsel %vm475, %v462, 0
        %v489 = vsel %vm475, %v463, 0
        %v492 = vsel %vm475, %v464, 0
        %v495 = vsel %vm475, %v465, 0
        %v498 = vsel %vm475, %v466, 0
        %vm500 = vcmask 1043456
        %v502 = vsel %vm500, %v467, 0
        %504 = vmatprep.subr.bf16.mxu0 0
        %505 = vmatpush1.bf16.msra.mxu0 %v502
        %506 = vmatprep.subr.bf16.mxu0 0
        %507 = vmatpush1.bf16.msra.mxu0 0
        %508 = vmatprep.subr.bf16.mxu0 0
        %509 = vmatpush1.bf16.msra.mxu0 0
        %510 = vmatprep.subr.bf16.mxu0 0
        %511 = vmatpush1.bf16.msra.mxu0 0
        %512 = vmatprep.subr.bf16.mxu0 0
        %513 = vmatpush1.bf16.msra.mxu0 0
        %514 = vmatprep.subr.bf16.mxu0 0
        %515 = vmatpush1.bf16.msra.mxu0 0
        %516 = vmatprep.subr.bf16.mxu0 0
        %517 = vmatpush1.bf16.msra.mxu0 0
        %518 = vmatprep.subr.bf16.mxu0 0
        %519 = vmatpush1.bf16.msra.mxu0 0
        %520 = vmatprep.subr.bf16.mxu0 0
        %521 = vmatpush1.bf16.msra.mxu0 0
        %522 = vmatprep.subr.bf16.mxu0 0
        %523 = vmatpush1.bf16.msra.mxu0 0
        %524 = vmatprep.subr.bf16.mxu0 0
        %525 = vmatpush1.bf16.msra.mxu0 0
        %526 = vmatprep.subr.bf16.mxu0 0
        %527 = vmatpush1.bf16.msra.mxu0 0
        %528 = vmatprep.subr.bf16.mxu0 0
        %529 = vmatpush1.bf16.msra.mxu0 0
        %530 = vmatprep.subr.bf16.mxu0 0
        %531 = vmatpush1.bf16.msra.mxu0 0
        %532 = vmatprep.subr.bf16.mxu0 0
        %533 = vmatpush1.bf16.msra.mxu0 0
        %534 = vmatprep.subr.bf16.mxu0 0
        %535 = vmatpush1.bf16.msra.mxu0 0
        %536 = vmatprep.mubr.bf16.mxu0 0
        %537 = vmatmul.mubr.bf16.gmra.mrb[0].mxu0 %v477
        %v538 = vpop.f32.mrb[0].mxu0
        %v539 = vadd.f32 %v473, %v538
        %v540 = vpop.f32.mrb[0].mxu0
        %v541 = vpop.f32.mrb[0].mxu0
        %v542 = vadd.f32 %v473, %v541
        %v543 = vpop.f32.mrb[0].mxu0
        %544 = vmatprep.mubr.bf16.mxu0 0
        %545 = vmatmul.mubr.bf16.gmra.mrb[0].mxu0 %v480
        %v546 = vpop.f32.mrb[0].mxu0
        %v547 = vadd.f32 %v473, %v546
        %v548 = vpop.f32.mrb[0].mxu0
        %v549 = vpop.f32.mrb[0].mxu0
        %v550 = vadd.f32 %v473, %v549
        %v551 = vpop.f32.mrb[0].mxu0
        %552 = vmatprep.mubr.bf16.mxu0 0
        %553 = vmatmul.mubr.bf16.gmra.mrb[0].mxu0 %v483
        %v554 = vpop.f32.mrb[0].mxu0
        %v555 = vadd.f32 %v473, %v554
        %v556 = vpop.f32.mrb[0].mxu0
        %v557 = vpop.f32.mrb[0].mxu0
        %v558 = vadd.f32 %v473, %v557
        %v559 = vpop.f32.mrb[0].mxu0
        %560 = vmatprep.mubr.bf16.mxu0 0
        %561 = vmatmul.mubr.bf16.gmra.mrb[0].mxu0 %v486
        %v562 = vpop.f32.mrb[0].mxu0
        %v563 = vadd.f32 %v473, %v562
        %v564 = vpop.f32.mrb[0].mxu0
        %v565 = vpop.f32.mrb[0].mxu0
        %v566 = vadd.f32 %v473, %v565
        %v567 = vpop.f32.mrb[0].mxu0
        %568 = vmatprep.mubr.bf16.mxu0 0
        %569 = vmatmul.mubr.bf16.gmra.mrb[0].mxu0 %v489
        %v570 = vpop.f32.mrb[0].mxu0
        %v571 = vadd.f32 %v473, %v570
        %v572 = vpop.f32.mrb[0].mxu0
        %v573 = vpop.f32.mrb[0].mxu0
        %v574 = vadd.f32 %v473, %v573
        %v575 = vpop.f32.mrb[0].mxu0
        %576 = vmatprep.mubr.bf16.mxu0 0
        %577 = vmatmul.mubr.bf16.gmra.mrb[0].mxu0 %v492
        %v578 = vpop.f32.mrb[0].mxu0
        %v579 = vadd.f32 %v473, %v578
        %v580 = vpop.f32.mrb[0].mxu0
        %v581 = vpop.f32.mrb[0].mxu0
        %v582 = vadd.f32 %v473, %v581
        %v583 = vpop.f32.mrb[0].mxu0
        %584 = vmatprep.mubr.bf16.mxu0 0
        %585 = vmatmul.mubr.bf16.gmra.mrb[0].mxu0 %v495
        %v586 = vpop.f32.mrb[0].mxu0
        %v587 = vadd.f32 %v473, %v586
        %v588 = vpop.f32.mrb[0].mxu0
        %v589 = vpop.f32.mrb[0].mxu0
        %v590 = vadd.f32 %v473, %v589
        %v591 = vpop.f32.mrb[0].mxu0
        %592 = vmatprep.mubr.bf16.mxu0 0
        %593 = vmatmul.mubr.bf16.gmra.mrb[0].mxu0 %v498
        %v594 = vpop.f32.mrb[0].mxu0
        %v595 = vadd.f32 %v473, %v594
        %v596 = vpop.f32.mrb[0].mxu0
        %v597 = vpop.f32.mrb[0].mxu0
        %v598 = vadd.f32 %v473, %v597
        %v599 = vpop.f32.mrb[0].mxu0
        %600 = vdwg.mxu0
        %v601 = vmax.f32 %v539, 0.0
        %v602 = vmax.f32 %v542, 0.0
        %v603 = vmax.f32 %v547, 0.0
        %v604 = vmax.f32 %v550, 0.0
        %v605 = vmax.f32 %v555, 0.0
        %v606 = vmax.f32 %v558, 0.0
        %v607 = vmax.f32 %v563, 0.0
        %v608 = vmax.f32 %v566, 0.0
        %v609 = vmax.f32 %v571, 0.0
        %v610 = vmax.f32 %v574, 0.0
        %v611 = vmax.f32 %v579, 0.0
        %v612 = vmax.f32 %v582, 0.0
        %v613 = vmax.f32 %v587, 0.0
        %v614 = vmax.f32 %v590, 0.0
        %v615 = vmax.f32 %v595, 0.0
        %v616 = vmax.f32 %v598, 0.0
        %v617 = vpack.c.bf16 %v602, %v601
        %v618 = vpack.c.bf16 %v604, %v603
        %v619 = vpack.c.bf16 %v606, %v605
        %v620 = vpack.c.bf16 %v608, %v607
        %v621 = vpack.c.bf16 %v610, %v609
        %v622 = vpack.c.bf16 %v612, %v611
        %v623 = vpack.c.bf16 %v614, %v613
        %v624 = vpack.c.bf16 %v616, %v615
        %v625 = vld [vmem:[%s3] sm:$0xf]
        %v626 = vld [vmem:[%s3 + $0x4] sm:$0xf]
        %v627 = vld [vmem:[%s3 + $0x8] sm:$0xf]
        %v628 = vld [vmem:[%s3 + $0xc] sm:$0xf]
        %v629 = vld [vmem:[%s4] sm:$0x1]
        %v631 = vlaneseq
        %v632 = vshrl.u32 %v631, 7
        %v633 = vsub.s32 0, %v632
        %v634 = vrot.slane %v629, %v633
        %v640 = vunpack.c.l.b16 %v625
        %v641 = vunpack.c.l.b16 %v626
        %v642 = vunpack.c.l.b16 %v627
        %v643 = vunpack.c.l.b16 %v628
        %v644 = vpack.c.b16 %v641, %v640
        %v645 = vpack.c.b16 %v643, %v642
        %vm648 = vcmask 261120
        %v650 = vsel %vm648, %v617, 0
        %v653 = vsel %vm648, %v618, 0
        %v656 = vsel %vm648, %v619, 0
        %v659 = vsel %vm648, %v620, 0
        %v662 = vsel %vm648, %v621, 0
        %v665 = vsel %vm648, %v622, 0
        %v668 = vsel %vm648, %v623, 0
        %v671 = vsel %vm648, %v624, 0
        %673 = vmatprep.subr.bf16.mxu0 0
        %674 = vmatpush1.bf16.msra.mxu0 %v644
        %675 = vmatprep.subr.bf16.mxu0 0
        %676 = vmatpush1.bf16.msra.mxu0 %v645
        %677 = vmatprep.subr.bf16.mxu0 0
        %678 = vmatpush1.bf16.msra.mxu0 0
        %679 = vmatprep.subr.bf16.mxu0 0
        %680 = vmatpush1.bf16.msra.mxu0 0
        %681 = vmatprep.subr.bf16.mxu0 0
        %682 = vmatpush1.bf16.msra.mxu0 0
        %683 = vmatprep.subr.bf16.mxu0 0
        %684 = vmatpush1.bf16.msra.mxu0 0
        %685 = vmatprep.subr.bf16.mxu0 0
        %686 = vmatpush1.bf16.msra.mxu0 0
        %687 = vmatprep.subr.bf16.mxu0 0
        %688 = vmatpush1.bf16.msra.mxu0 0
        %689 = vmatprep.subr.bf16.mxu0 0
        %690 = vmatpush1.bf16.msra.mxu0 0
        %691 = vmatprep.subr.bf16.mxu0 0
        %692 = vmatpush1.bf16.msra.mxu0 0
        %693 = vmatprep.subr.bf16.mxu0 0
        %694 = vmatpush1.bf16.msra.mxu0 0
        %695 = vmatprep.subr.bf16.mxu0 0
        %696 = vmatpush1.bf16.msra.mxu0 0
        %697 = vmatprep.subr.bf16.mxu0 0
        %698 = vmatpush1.bf16.msra.mxu0 0
        %699 = vmatprep.subr.bf16.mxu0 0
        %700 = vmatpush1.bf16.msra.mxu0 0
        %701 = vmatprep.subr.bf16.mxu0 0
        %702 = vmatpush1.bf16.msra.mxu0 0
        %703 = vmatprep.subr.bf16.mxu0 0
        %704 = vmatpush1.bf16.msra.mxu0 0
        %705 = vmatprep.mubr.bf16.mxu0 0
        %706 = vmatmul.mubr.bf16.gmra.mrb[0].mxu0 %v650
        %v707 = vpop.f32.mrb[0].mxu0
        %v708 = vadd.f32 %v634, %v707
        %v709 = vpop.f32.mrb[0].mxu0
        %v710 = vpop.f32.mrb[0].mxu0
        %v711 = vadd.f32 %v634, %v710
        %v712 = vpop.f32.mrb[0].mxu0
        %713 = vmatprep.mubr.bf16.mxu0 0
        %714 = vmatmul.mubr.bf16.gmra.mrb[0].mxu0 %v653
        %v715 = vpop.f32.mrb[0].mxu0
        %v716 = vadd.f32 %v634, %v715
        %v717 = vpop.f32.mrb[0].mxu0
        %v718 = vpop.f32.mrb[0].mxu0
        %v719 = vadd.f32 %v634, %v718
        %v720 = vpop.f32.mrb[0].mxu0
        %721 = vmatprep.mubr.bf16.mxu0 0
        %722 = vmatmul.mubr.bf16.gmra.mrb[0].mxu0 %v656
        %v723 = vpop.f32.mrb[0].mxu0
        %v724 = vadd.f32 %v634, %v723
        %v725 = vpop.f32.mrb[0].mxu0
        %v726 = vpop.f32.mrb[0].mxu0
        %v727 = vadd.f32 %v634, %v726
        %v728 = vpop.f32.mrb[0].mxu0
        %729 = vmatprep.mubr.bf16.mxu0 0
        %730 = vmatmul.mubr.bf16.gmra.mrb[0].mxu0 %v659
        %v731 = vpop.f32.mrb[0].mxu0
        %v732 = vadd.f32 %v634, %v731
        %v733 = vpop.f32.mrb[0].mxu0
        %v734 = vpop.f32.mrb[0].mxu0
        %v735 = vadd.f32 %v634, %v734
        %v736 = vpop.f32.mrb[0].mxu0
        %737 = vmatprep.mubr.bf16.mxu0 0
        %738 = vmatmul.mubr.bf16.gmra.mrb[0].mxu0 %v662
        %v739 = vpop.f32.mrb[0].mxu0
        %v740 = vadd.f32 %v634, %v739
        %v741 = vpop.f32.mrb[0].mxu0
        %v742 = vpop.f32.mrb[0].mxu0
        %v743 = vadd.f32 %v634, %v742
        %v744 = vpop.f32.mrb[0].mxu0
        %745 = vmatprep.mubr.bf16.mxu0 0
        %746 = vmatmul.mubr.bf16.gmra.mrb[0].mxu0 %v665
        %v747 = vpop.f32.mrb[0].mxu0
        %v748 = vadd.f32 %v634, %v747
        %v749 = vpop.f32.mrb[0].mxu0
        %v750 = vpop.f32.mrb[0].mxu0
        %v751 = vadd.f32 %v634, %v750
        %v752 = vpop.f32.mrb[0].mxu0
        %753 = vmatprep.mubr.bf16.mxu0 0
        %754 = vmatmul.mubr.bf16.gmra.mrb[0].mxu0 %v668
        %v755 = vpop.f32.mrb[0].mxu0
        %v756 = vadd.f32 %v634, %v755
        %v757 = vpop.f32.mrb[0].mxu0
        %v758 = vpop.f32.mrb[0].mxu0
        %v759 = vadd.f32 %v634, %v758
        %v760 = vpop.f32.mrb[0].mxu0
        %761 = vmatprep.mubr.bf16.mxu0 0
        %762 = vmatmul.mubr.bf16.gmra.mrb[0].mxu0 %v671
        %v763 = vpop.f32.mrb[0].mxu0
        %v764 = vadd.f32 %v634, %v763
        %v765 = vpop.f32.mrb[0].mxu0
        %v766 = vpop.f32.mrb[0].mxu0
        %v767 = vadd.f32 %v634, %v766
        %v768 = vpop.f32.mrb[0].mxu0
        %769 = vdwg.mxu0
        %v770 = vmax.f32 %v708, 0.0
        %v771 = vmax.f32 %v711, 0.0
        %v772 = vmax.f32 %v716, 0.0
        %v773 = vmax.f32 %v719, 0.0
        %v774 = vmax.f32 %v724, 0.0
        %v775 = vmax.f32 %v727, 0.0
        %v776 = vmax.f32 %v732, 0.0
        %v777 = vmax.f32 %v735, 0.0
        %v778 = vmax.f32 %v740, 0.0
        %v779 = vmax.f32 %v743, 0.0
        %v780 = vmax.f32 %v748, 0.0
        %v781 = vmax.f32 %v751, 0.0
        %v782 = vmax.f32 %v756, 0.0
        %v783 = vmax.f32 %v759, 0.0
        %v784 = vmax.f32 %v764, 0.0
        %v785 = vmax.f32 %v767, 0.0
        %v786 = vsel %vm648, %v770, %v601
        %v787 = vsel %vm648, %v771, %v602
        %v788 = vsel %vm648, %v772, %v603
        %v789 = vsel %vm648, %v773, %v604
        %v790 = vsel %vm648, %v774, %v605
        %v791 = vsel %vm648, %v775, %v606
        %v792 = vsel %vm648, %v776, %v607
        %v793 = vsel %vm648, %v777, %v608
        %v794 = vsel %vm648, %v778, %v609
        %v795 = vsel %vm648, %v779, %v610
        %v796 = vsel %vm648, %v780, %v611
        %v797 = vsel %vm648, %v781, %v612
        %v798 = vsel %vm648, %v782, %v613
        %v799 = vsel %vm648, %v783, %v614
        %v800 = vsel %vm648, %v784, %v615
        %v801 = vsel %vm648, %v785, %v616
        %v802 = vpack.c.bf16 %v787, %v786
        %v803 = vpack.c.bf16 %v789, %v788
        %v804 = vpack.c.bf16 %v791, %v790
        %v805 = vpack.c.bf16 %v793, %v792
        %v806 = vpack.c.bf16 %v795, %v794
        %v807 = vpack.c.bf16 %v797, %v796
        %v808 = vpack.c.bf16 %v799, %v798
        %v809 = vpack.c.bf16 %v801, %v800
        %v810 = vld [vmem:[%s5] sm:$0xff]
        %v811 = vld [vmem:[%s5 + $0x8] sm:$0xff]
        %v812 = vld [vmem:[%s5 + $0x10] sm:$0xff]
        %v813 = vld [vmem:[%s5 + $0x18] sm:$0xff]
        %v814 = vld [vmem:[%s5 + $0x20] sm:$0xff]
        %v815 = vld [vmem:[%s5 + $0x28] sm:$0xff]
        %v816 = vld [vmem:[%s5 + $0x30] sm:$0xff]
        %v817 = vld [vmem:[%s5 + $0x38] sm:$0xff]
        %v818 = vld [vmem:[%s6] sm:$0x3]
        %v820 = vlaneseq
        %v821 = vshrl.u32 %v820, 7
        %v822 = vsub.s32 0, %v821
        %v823 = vrot.slane %v818, %v822
        %v824 = vlaneseq
        %v825 = vshrl.u32 %v824, 7
        %v826 = vsub.s32 1, %v825
        %v827 = vrot.slane %v818, %v826
        %v838 = vunpack.c.l.b16 %v810
        %v839 = vunpack.c.h.b16 %v810
        %v840 = vunpack.c.l.b16 %v811
        %v841 = vunpack.c.h.b16 %v811
        %v842 = vunpack.c.l.b16 %v812
        %v843 = vunpack.c.h.b16 %v812
        %v844 = vunpack.c.l.b16 %v813
        %v845 = vunpack.c.h.b16 %v813
        %v846 = vunpack.c.l.b16 %v814
        %v847 = vunpack.c.h.b16 %v814
        %v848 = vunpack.c.l.b16 %v815
        %v849 = vunpack.c.h.b16 %v815
        %v850 = vunpack.c.l.b16 %v816
        %v851 = vunpack.c.h.b16 %v816
        %v852 = vunpack.c.l.b16 %v817
        %v853 = vunpack.c.h.b16 %v817
        %v854 = vpack.c.b16 %v840, %v838
        %v855 = vpack.c.b16 %v841, %v839
        %v856 = vpack.c.b16 %v844, %v842
        %v857 = vpack.c.b16 %v845, %v843
        %v858 = vpack.c.b16 %v848, %v846
        %v859 = vpack.c.b16 %v849, %v847
        %v860 = vpack.c.b16 %v852, %v850
        %v861 = vpack.c.b16 %v853, %v851
        %vm870 = vcmask 523264
        %v872 = vsel %vm870, %v802, 0
        %v875 = vsel %vm870, %v803, 0
        %v878 = vsel %vm870, %v804, 0
        %v881 = vsel %vm870, %v805, 0
        %v884 = vsel %vm870, %v806, 0
        %v887 = vsel %vm870, %v807, 0
        %v890 = vsel %vm870, %v808, 0
        %v893 = vsel %vm870, %v809, 0
        %895 = vmatprep.subr.bf16.mxu0 %v855
        %896 = vmatpush1.bf16.msra.mxu0 %v854
        %897 = vmatprep.subr.bf16.mxu0 %v857
        %898 = vmatpush1.bf16.msra.mxu0 %v856
        %899 = vmatprep.subr.bf16.mxu0 %v859
        %900 = vmatpush1.bf16.msra.mxu0 %v858
        %901 = vmatprep.subr.bf16.mxu0 %v861
        %902 = vmatpush1.bf16.msra.mxu0 %v860
        %903 = vmatprep.subr.bf16.mxu0 0
        %904 = vmatpush1.bf16.msra.mxu0 0
        %905 = vmatprep.subr.bf16.mxu0 0
        %906 = vmatpush1.bf16.msra.mxu0 0
        %907 = vmatprep.subr.bf16.mxu0 0
        %908 = vmatpush1.bf16.msra.mxu0 0
        %909 = vmatprep.subr.bf16.mxu0 0
        %910 = vmatpush1.bf16.msra.mxu0 0
        %911 = vmatprep.subr.bf16.mxu0 0
        %912 = vmatpush1.bf16.msra.mxu0 0
        %913 = vmatprep.subr.bf16.mxu0 0
        %914 = vmatpush1.bf16.msra.mxu0 0
        %915 = vmatprep.subr.bf16.mxu0 0
        %916 = vmatpush1.bf16.msra.mxu0 0
        %917 = vmatprep.subr.bf16.mxu0 0
        %918 = vmatpush1.bf16.msra.mxu0 0
        %919 = vmatprep.subr.bf16.mxu0 0
        %920 = vmatpush1.bf16.msra.mxu0 0
        %921 = vmatprep.subr.bf16.mxu0 0
        %922 = vmatpush1.bf16.msra.mxu0 0
        %923 = vmatprep.subr.bf16.mxu0 0
        %924 = vmatpush1.bf16.msra.mxu0 0
        %925 = vmatprep.subr.bf16.mxu0 0
        %926 = vmatpush1.bf16.msra.mxu0 0
        %927 = vmatprep.mubr.bf16.mxu0 0
        %928 = vmatmul.mubr.bf16.gmra.mrb[0].mxu0 %v872
        %v929 = vpop.f32.mrb[0].mxu0
        %v930 = vadd.f32 %v823, %v929
        %v931 = vpop.f32.mrb[0].mxu0
        %v932 = vadd.f32 %v827, %v931
        %v933 = vpop.f32.mrb[0].mxu0
        %v934 = vadd.f32 %v823, %v933
        %v935 = vpop.f32.mrb[0].mxu0
        %v936 = vadd.f32 %v827, %v935
        %937 = vmatprep.mubr.bf16.mxu0 0
        %938 = vmatmul.mubr.bf16.gmra.mrb[0].mxu0 %v875
        %v939 = vpop.f32.mrb[0].mxu0
        %v940 = vadd.f32 %v823, %v939
        %v941 = vpop.f32.mrb[0].mxu0
        %v942 = vadd.f32 %v827, %v941
        %v943 = vpop.f32.mrb[0].mxu0
        %v944 = vadd.f32 %v823, %v943
        %v945 = vpop.f32.mrb[0].mxu0
        %v946 = vadd.f32 %v827, %v945
        %947 = vmatprep.mubr.bf16.mxu0 0
        %948 = vmatmul.mubr.bf16.gmra.mrb[0].mxu0 %v878
        %v949 = vpop.f32.mrb[0].mxu0
        %v950 = vadd.f32 %v823, %v949
        %v951 = vpop.f32.mrb[0].mxu0
        %v952 = vadd.f32 %v827, %v951
        %v953 = vpop.f32.mrb[0].mxu0
        %v954 = vadd.f32 %v823, %v953
        %v955 = vpop.f32.mrb[0].mxu0
        %v956 = vadd.f32 %v827, %v955
        %957 = vmatprep.mubr.bf16.mxu0 0
        %958 = vmatmul.mubr.bf16.gmra.mrb[0].mxu0 %v881
        %v959 = vpop.f32.mrb[0].mxu0
        %v960 = vadd.f32 %v823, %v959
        %v961 = vpop.f32.mrb[0].mxu0
        %v962 = vadd.f32 %v827, %v961
        %v963 = vpop.f32.mrb[0].mxu0
        %v964 = vadd.f32 %v823, %v963
        %v965 = vpop.f32.mrb[0].mxu0
        %v966 = vadd.f32 %v827, %v965
        %967 = vmatprep.mubr.bf16.mxu0 0
        %968 = vmatmul.mubr.bf16.gmra.mrb[0].mxu0 %v884
        %v969 = vpop.f32.mrb[0].mxu0
        %v970 = vadd.f32 %v823, %v969
        %v971 = vpop.f32.mrb[0].mxu0
        %v972 = vadd.f32 %v827, %v971
        %v973 = vpop.f32.mrb[0].mxu0
        %v974 = vadd.f32 %v823, %v973
        %v975 = vpop.f32.mrb[0].mxu0
        %v976 = vadd.f32 %v827, %v975
        %977 = vmatprep.mubr.bf16.mxu0 0
        %978 = vmatmul.mubr.bf16.gmra.mrb[0].mxu0 %v887
        %v979 = vpop.f32.mrb[0].mxu0
        %v980 = vadd.f32 %v823, %v979
        %v981 = vpop.f32.mrb[0].mxu0
        %v982 = vadd.f32 %v827, %v981
        %v983 = vpop.f32.mrb[0].mxu0
        %v984 = vadd.f32 %v823, %v983
        %v985 = vpop.f32.mrb[0].mxu0
        %v986 = vadd.f32 %v827, %v985
        %987 = vmatprep.mubr.bf16.mxu0 0
        %988 = vmatmul.mubr.bf16.gmra.mrb[0].mxu0 %v890
        %v989 = vpop.f32.mrb[0].mxu0
        %v990 = vadd.f32 %v823, %v989
        %v991 = vpop.f32.mrb[0].mxu0
        %v992 = vadd.f32 %v827, %v991
        %v993 = vpop.f32.mrb[0].mxu0
        %v994 = vadd.f32 %v823, %v993
        %v995 = vpop.f32.mrb[0].mxu0
        %v996 = vadd.f32 %v827, %v995
        %997 = vmatprep.mubr.bf16.mxu0 0
        %998 = vmatmul.mubr.bf16.gmra.mrb[0].mxu0 %v893
        %v999 = vpop.f32.mrb[0].mxu0
        %v1000 = vadd.f32 %v823, %v999
        %v1001 = vpop.f32.mrb[0].mxu0
        %v1002 = vadd.f32 %v827, %v1001
        %v1003 = vpop.f32.mrb[0].mxu0
        %v1004 = vadd.f32 %v823, %v1003
        %v1005 = vpop.f32.mrb[0].mxu0
        %v1006 = vadd.f32 %v827, %v1005
        %1007 = vdwg.mxu0
        %v1008 = vmax.f32 %v932, 0.0
        %v1009 = vmax.f32 %v936, 0.0
        %v1010 = vmax.f32 %v942, 0.0
        %v1011 = vmax.f32 %v946, 0.0
        %v1012 = vmax.f32 %v952, 0.0
        %v1013 = vmax.f32 %v956, 0.0
        %v1014 = vmax.f32 %v962, 0.0
        %v1015 = vmax.f32 %v966, 0.0
        %v1016 = vmax.f32 %v972, 0.0
        %v1017 = vmax.f32 %v976, 0.0
        %v1018 = vmax.f32 %v982, 0.0
        %v1019 = vmax.f32 %v986, 0.0
        %v1020 = vmax.f32 %v992, 0.0
        %v1021 = vmax.f32 %v996, 0.0
        %v1022 = vmax.f32 %v1002, 0.0
        %v1023 = vmax.f32 %v1006, 0.0
        %vm1024 = vcmp.gt.f32.partialorder %v930, -0.84729785
        %vm1025 = vcmp.gt.f32.partialorder %v934, -0.84729785
        %vm1026 = vcmp.gt.f32.partialorder %v940, -0.84729785
        %vm1027 = vcmp.gt.f32.partialorder %v944, -0.84729785
        %vm1028 = vcmp.gt.f32.partialorder %v950, -0.84729785
        %vm1029 = vcmp.gt.f32.partialorder %v954, -0.84729785
        %vm1030 = vcmp.gt.f32.partialorder %v960, -0.84729785
        %vm1031 = vcmp.gt.f32.partialorder %v964, -0.84729785
        %vm1032 = vcmp.gt.f32.partialorder %v970, -0.84729785
        %vm1033 = vcmp.gt.f32.partialorder %v974, -0.84729785
        %vm1034 = vcmp.gt.f32.partialorder %v980, -0.84729785
        %vm1035 = vcmp.gt.f32.partialorder %v984, -0.84729785
        %vm1036 = vcmp.gt.f32.partialorder %v990, -0.84729785
        %vm1037 = vcmp.gt.f32.partialorder %v994, -0.84729785
        %vm1038 = vcmp.gt.f32.partialorder %v1000, -0.84729785
        %vm1039 = vcmp.gt.f32.partialorder %v1004, -0.84729785
        %v1040 = vsel %vm1024, 1, 0
        %v1041 = vsel %vm1025, 1, 0
        %v1042 = vsel %vm1026, 1, 0
        %v1043 = vsel %vm1027, 1, 0
        %v1044 = vsel %vm1028, 1, 0
        %v1045 = vsel %vm1029, 1, 0
        %v1046 = vsel %vm1030, 1, 0
        %v1047 = vsel %vm1031, 1, 0
        %v1048 = vsel %vm1032, 1, 0
        %v1049 = vsel %vm1033, 1, 0
        %v1050 = vsel %vm1034, 1, 0
        %v1051 = vsel %vm1035, 1, 0
        %v1052 = vsel %vm1036, 1, 0
        %v1053 = vsel %vm1037, 1, 0
        %v1054 = vsel %vm1038, 1, 0
        %v1055 = vsel %vm1039, 1, 0
        %v1056 = vcvt.s32.f32 %v1040
        %v1057 = vcvt.s32.f32 %v1041
        %v1058 = vcvt.s32.f32 %v1042
        %v1059 = vcvt.s32.f32 %v1043
        %v1060 = vcvt.s32.f32 %v1044
        %v1061 = vcvt.s32.f32 %v1045
        %v1062 = vcvt.s32.f32 %v1046
        %v1063 = vcvt.s32.f32 %v1047
        %v1064 = vcvt.s32.f32 %v1048
        %v1065 = vcvt.s32.f32 %v1049
        %v1066 = vcvt.s32.f32 %v1050
        %v1067 = vcvt.s32.f32 %v1051
        %v1068 = vcvt.s32.f32 %v1052
        %v1069 = vcvt.s32.f32 %v1053
        %v1070 = vcvt.s32.f32 %v1054
        %v1071 = vcvt.s32.f32 %v1055
        %v1072 = vmul.f32 %v443, %v443
        %v1073 = vmul.f32 %v444, %v444
        %v1074 = vmul.f32 %v445, %v445
        %v1075 = vmul.f32 %v446, %v446
        %v1076 = vmul.f32 %v447, %v447
        %v1077 = vmul.f32 %v448, %v448
        %v1078 = vmul.f32 %v449, %v449
        %v1079 = vmul.f32 %v450, %v450
        %v1080 = vmul.f32 %v451, %v451
        %v1081 = vmul.f32 %v452, %v452
        %v1082 = vmul.f32 %v453, %v453
        %v1083 = vmul.f32 %v454, %v454
        %v1084 = vmul.f32 %v455, %v455
        %v1085 = vmul.f32 %v456, %v456
        %v1086 = vmul.f32 %v457, %v457
        %v1087 = vmul.f32 %v458, %v458
        %vm1088 = vcmask 23552
        %v1089 = vsel %vm1088, %v1072, 0.0
        %1090 = vadd.xlane.f32.xlu0 %v1089
        %v1091 = vpop.xlane.xlu0 %1090
        %v1092 = vsel %vm1088, %v1073, 0.0
        %1093 = vadd.xlane.f32.xlu0 %v1092
        %v1094 = vpop.xlane.xlu0 %1093
        %v1095 = vsel %vm1088, %v1074, 0.0
        %1096 = vadd.xlane.f32.xlu0 %v1095
        %v1097 = vpop.xlane.xlu0 %1096
        %v1098 = vsel %vm1088, %v1075, 0.0
        %1099 = vadd.xlane.f32.xlu0 %v1098
        %v1100 = vpop.xlane.xlu0 %1099
        %v1101 = vsel %vm1088, %v1076, 0.0
        %1102 = vadd.xlane.f32.xlu0 %v1101
        %v1103 = vpop.xlane.xlu0 %1102
        %v1104 = vsel %vm1088, %v1077, 0.0
        %1105 = vadd.xlane.f32.xlu0 %v1104
        %v1106 = vpop.xlane.xlu0 %1105
        %v1107 = vsel %vm1088, %v1078, 0.0
        %1108 = vadd.xlane.f32.xlu0 %v1107
        %v1109 = vpop.xlane.xlu0 %1108
        %v1110 = vsel %vm1088, %v1079, 0.0
        %1111 = vadd.xlane.f32.xlu0 %v1110
        %v1112 = vpop.xlane.xlu0 %1111
        %v1113 = vsel %vm1088, %v1080, 0.0
        %1114 = vadd.xlane.f32.xlu0 %v1113
        %v1115 = vpop.xlane.xlu0 %1114
        %v1116 = vsel %vm1088, %v1081, 0.0
        %1117 = vadd.xlane.f32.xlu0 %v1116
        %v1118 = vpop.xlane.xlu0 %1117
        %v1119 = vsel %vm1088, %v1082, 0.0
        %1120 = vadd.xlane.f32.xlu0 %v1119
        %v1121 = vpop.xlane.xlu0 %1120
        %v1122 = vsel %vm1088, %v1083, 0.0
        %1123 = vadd.xlane.f32.xlu0 %v1122
        %v1124 = vpop.xlane.xlu0 %1123
        %v1125 = vsel %vm1088, %v1084, 0.0
        %1126 = vadd.xlane.f32.xlu0 %v1125
        %v1127 = vpop.xlane.xlu0 %1126
        %v1128 = vsel %vm1088, %v1085, 0.0
        %1129 = vadd.xlane.f32.xlu0 %v1128
        %v1130 = vpop.xlane.xlu0 %1129
        %v1131 = vsel %vm1088, %v1086, 0.0
        %1132 = vadd.xlane.f32.xlu0 %v1131
        %v1133 = vpop.xlane.xlu0 %1132
        %v1134 = vsel %vm1088, %v1087, 0.0
        %1135 = vadd.xlane.f32.xlu0 %v1134
        %v1136 = vpop.xlane.xlu0 %1135
        %v1137 = vrsqrt.pop %v1091
        %v1138 = vmul.f32 %v1091, %v1137
        %vm1139 = vcmp.eq.f32.partialorder %v1091, inf
        %v1140 = vsel %vm1139, %v1091, %v1138
        %vm1141 = vcmp.eq.f32.partialorder %v1091, 0.0
        %v1142 = vand.u32 %v1091, 2147483648
        %v1143 = vsel %vm1141, %v1142, %v1140
        %v1144 = vrsqrt.pop %v1094
        %v1145 = vmul.f32 %v1094, %v1144
        %vm1146 = vcmp.eq.f32.partialorder %v1094, inf
        %v1147 = vsel %vm1146, %v1094, %v1145
        %vm1148 = vcmp.eq.f32.partialorder %v1094, 0.0
        %v1149 = vand.u32 %v1094, 2147483648
        %v1150 = vsel %vm1148, %v1149, %v1147
        %v1151 = vrsqrt.pop %v1097
        %v1152 = vmul.f32 %v1097, %v1151
        %vm1153 = vcmp.eq.f32.partialorder %v1097, inf
        %v1154 = vsel %vm1153, %v1097, %v1152
        %vm1155 = vcmp.eq.f32.partialorder %v1097, 0.0
        %v1156 = vand.u32 %v1097, 2147483648
        %v1157 = vsel %vm1155, %v1156, %v1154
        %v1158 = vrsqrt.pop %v1100
        %v1159 = vmul.f32 %v1100, %v1158
        %vm1160 = vcmp.eq.f32.partialorder %v1100, inf
        %v1161 = vsel %vm1160, %v1100, %v1159
        %vm1162 = vcmp.eq.f32.partialorder %v1100, 0.0
        %v1163 = vand.u32 %v1100, 2147483648
        %v1164 = vsel %vm1162, %v1163, %v1161
        %v1165 = vrsqrt.pop %v1103
        %v1166 = vmul.f32 %v1103, %v1165
        %vm1167 = vcmp.eq.f32.partialorder %v1103, inf
        %v1168 = vsel %vm1167, %v1103, %v1166
        %vm1169 = vcmp.eq.f32.partialorder %v1103, 0.0
        %v1170 = vand.u32 %v1103, 2147483648
        %v1171 = vsel %vm1169, %v1170, %v1168
        %v1172 = vrsqrt.pop %v1106
        %v1173 = vmul.f32 %v1106, %v1172
        %vm1174 = vcmp.eq.f32.partialorder %v1106, inf
        %v1175 = vsel %vm1174, %v1106, %v1173
        %vm1176 = vcmp.eq.f32.partialorder %v1106, 0.0
        %v1177 = vand.u32 %v1106, 2147483648
        %v1178 = vsel %vm1176, %v1177, %v1175
        %v1179 = vrsqrt.pop %v1109
        %v1180 = vmul.f32 %v1109, %v1179
        %vm1181 = vcmp.eq.f32.partialorder %v1109, inf
        %v1182 = vsel %vm1181, %v1109, %v1180
        %vm1183 = vcmp.eq.f32.partialorder %v1109, 0.0
        %v1184 = vand.u32 %v1109, 2147483648
        %v1185 = vsel %vm1183, %v1184, %v1182
        %v1186 = vrsqrt.pop %v1112
        %v1187 = vmul.f32 %v1112, %v1186
        %vm1188 = vcmp.eq.f32.partialorder %v1112, inf
        %v1189 = vsel %vm1188, %v1112, %v1187
        %vm1190 = vcmp.eq.f32.partialorder %v1112, 0.0
        %v1191 = vand.u32 %v1112, 2147483648
        %v1192 = vsel %vm1190, %v1191, %v1189
        %v1193 = vrsqrt.pop %v1115
        %v1194 = vmul.f32 %v1115, %v1193
        %vm1195 = vcmp.eq.f32.partialorder %v1115, inf
        %v1196 = vsel %vm1195, %v1115, %v1194
        %vm1197 = vcmp.eq.f32.partialorder %v1115, 0.0
        %v1198 = vand.u32 %v1115, 2147483648
        %v1199 = vsel %vm1197, %v1198, %v1196
        %v1200 = vrsqrt.pop %v1118
        %v1201 = vmul.f32 %v1118, %v1200
        %vm1202 = vcmp.eq.f32.partialorder %v1118, inf
        %v1203 = vsel %vm1202, %v1118, %v1201
        %vm1204 = vcmp.eq.f32.partialorder %v1118, 0.0
        %v1205 = vand.u32 %v1118, 2147483648
        %v1206 = vsel %vm1204, %v1205, %v1203
        %v1207 = vrsqrt.pop %v1121
        %v1208 = vmul.f32 %v1121, %v1207
        %vm1209 = vcmp.eq.f32.partialorder %v1121, inf
        %v1210 = vsel %vm1209, %v1121, %v1208
        %vm1211 = vcmp.eq.f32.partialorder %v1121, 0.0
        %v1212 = vand.u32 %v1121, 2147483648
        %v1213 = vsel %vm1211, %v1212, %v1210
        %v1214 = vrsqrt.pop %v1124
        %v1215 = vmul.f32 %v1124, %v1214
        %vm1216 = vcmp.eq.f32.partialorder %v1124, inf
        %v1217 = vsel %vm1216, %v1124, %v1215
        %vm1218 = vcmp.eq.f32.partialorder %v1124, 0.0
        %v1219 = vand.u32 %v1124, 2147483648
        %v1220 = vsel %vm1218, %v1219, %v1217
        %v1221 = vrsqrt.pop %v1127
        %v1222 = vmul.f32 %v1127, %v1221
        %vm1223 = vcmp.eq.f32.partialorder %v1127, inf
        %v1224 = vsel %vm1223, %v1127, %v1222
        %vm1225 = vcmp.eq.f32.partialorder %v1127, 0.0
        %v1226 = vand.u32 %v1127, 2147483648
        %v1227 = vsel %vm1225, %v1226, %v1224
        %v1228 = vrsqrt.pop %v1130
        %v1229 = vmul.f32 %v1130, %v1228
        %vm1230 = vcmp.eq.f32.partialorder %v1130, inf
        %v1231 = vsel %vm1230, %v1130, %v1229
        %vm1232 = vcmp.eq.f32.partialorder %v1130, 0.0
        %v1233 = vand.u32 %v1130, 2147483648
        %v1234 = vsel %vm1232, %v1233, %v1231
        %v1235 = vrsqrt.pop %v1133
        %v1236 = vmul.f32 %v1133, %v1235
        %vm1237 = vcmp.eq.f32.partialorder %v1133, inf
        %v1238 = vsel %vm1237, %v1133, %v1236
        %vm1239 = vcmp.eq.f32.partialorder %v1133, 0.0
        %v1240 = vand.u32 %v1133, 2147483648
        %v1241 = vsel %vm1239, %v1240, %v1238
        %v1242 = vrsqrt.pop %v1136
        %v1243 = vmul.f32 %v1136, %v1242
        %vm1244 = vcmp.eq.f32.partialorder %v1136, inf
        %v1245 = vsel %vm1244, %v1136, %v1243
        %vm1246 = vcmp.eq.f32.partialorder %v1136, 0.0
        %v1247 = vand.u32 %v1136, 2147483648
        %v1248 = vsel %vm1246, %v1247, %v1245
        %v1249 = vpack.c.bf16 %v1009, %v1008
        %v1250 = vpack.c.bf16 %v1011, %v1010
        %v1251 = vpack.c.bf16 %v1013, %v1012
        %v1252 = vpack.c.bf16 %v1015, %v1014
        %v1253 = vpack.c.bf16 %v1017, %v1016
        %v1254 = vpack.c.bf16 %v1019, %v1018
        %v1255 = vpack.c.bf16 %v1021, %v1020
        %v1256 = vpack.c.bf16 %v1023, %v1022
        %v1257 = vld [vmem:[%s7] sm:$0xf]
        %v1258 = vld [vmem:[%s7 + $0x4] sm:$0xf]
        %v1259 = vld [vmem:[%s7 + $0x8] sm:$0xf]
        %v1260 = vld [vmem:[%s7 + $0xc] sm:$0xf]
        %v1261 = vld [vmem:[%s8] sm:$0x1]
        %1263 = vset.pattern.permute.xlu0 32
        %1264 = vperm.xlu0 %1263, %v1056
        %v1265 = vpop.permute.xlu0 %1264
        %1268 = vset.pattern.permute.xlu0 32
        %1269 = vperm.xlu0 %1268, %v1057
        %v1270 = vpop.permute.xlu0 %1269
        %1273 = vset.pattern.permute.xlu0 32
        %1274 = vperm.xlu0 %1273, %v1058
        %v1275 = vpop.permute.xlu0 %1274
        %1278 = vset.pattern.permute.xlu0 32
        %1279 = vperm.xlu0 %1278, %v1059
        %v1280 = vpop.permute.xlu0 %1279
        %1283 = vset.pattern.permute.xlu0 32
        %1284 = vperm.xlu0 %1283, %v1060
        %v1285 = vpop.permute.xlu0 %1284
        %1288 = vset.pattern.permute.xlu0 32
        %1289 = vperm.xlu0 %1288, %v1061
        %v1290 = vpop.permute.xlu0 %1289
        %1293 = vset.pattern.permute.xlu0 32
        %1294 = vperm.xlu0 %1293, %v1062
        %v1295 = vpop.permute.xlu0 %1294
        %1298 = vset.pattern.permute.xlu0 32
        %1299 = vperm.xlu0 %1298, %v1063
        %v1300 = vpop.permute.xlu0 %1299
        %1303 = vset.pattern.permute.xlu0 32
        %1304 = vperm.xlu0 %1303, %v1064
        %v1305 = vpop.permute.xlu0 %1304
        %1308 = vset.pattern.permute.xlu0 32
        %1309 = vperm.xlu0 %1308, %v1065
        %v1310 = vpop.permute.xlu0 %1309
        %1313 = vset.pattern.permute.xlu0 32
        %1314 = vperm.xlu0 %1313, %v1066
        %v1315 = vpop.permute.xlu0 %1314
        %1318 = vset.pattern.permute.xlu0 32
        %1319 = vperm.xlu0 %1318, %v1067
        %v1320 = vpop.permute.xlu0 %1319
        %1323 = vset.pattern.permute.xlu0 32
        %1324 = vperm.xlu0 %1323, %v1068
        %v1325 = vpop.permute.xlu0 %1324
        %1328 = vset.pattern.permute.xlu0 32
        %1329 = vperm.xlu0 %1328, %v1069
        %v1330 = vpop.permute.xlu0 %1329
        %1333 = vset.pattern.permute.xlu0 32
        %1334 = vperm.xlu0 %1333, %v1070
        %v1335 = vpop.permute.xlu0 %1334
        %1338 = vset.pattern.permute.xlu0 32
        %1339 = vperm.xlu0 %1338, %v1071
        %v1340 = vpop.permute.xlu0 %1339
        %v1343 = vlaneseq
        %v1344 = vshrl.u32 %v1343, 7
        %v1345 = vsub.s32 0, %v1344
        %v1346 = vrot.slane %v1261, %v1345
        %v1348 = vmul.f32 %v1265, %v1346
        %v1349 = vmul.f32 %v1270, %v1346
        %v1350 = vmul.f32 %v1275, %v1346
        %v1351 = vmul.f32 %v1280, %v1346
        %v1352 = vmul.f32 %v1285, %v1346
        %v1353 = vmul.f32 %v1290, %v1346
        %v1354 = vmul.f32 %v1295, %v1346
        %v1355 = vmul.f32 %v1300, %v1346
        %v1356 = vmul.f32 %v1305, %v1346
        %v1357 = vmul.f32 %v1310, %v1346
        %v1358 = vmul.f32 %v1315, %v1346
        %v1359 = vmul.f32 %v1320, %v1346
        %v1360 = vmul.f32 %v1325, %v1346
        %v1361 = vmul.f32 %v1330, %v1346
        %v1362 = vmul.f32 %v1335, %v1346
        %v1363 = vmul.f32 %v1340, %v1346
        %v1368 = vunpack.c.l.b16 %v1257
        %v1369 = vunpack.c.l.b16 %v1258
        %v1370 = vunpack.c.l.b16 %v1259
        %v1371 = vunpack.c.l.b16 %v1260
        %v1372 = vpack.c.b16 %v1369, %v1368
        %v1373 = vpack.c.b16 %v1371, %v1370
        %v1377 = vsel %vm648, %v1249, 0
        %v1380 = vsel %vm648, %v1250, 0
        %v1383 = vsel %vm648, %v1251, 0
        %v1386 = vsel %vm648, %v1252, 0
        %v1389 = vsel %vm648, %v1253, 0
        %v1392 = vsel %vm648, %v1254, 0
        %v1395 = vsel %vm648, %v1255, 0
        %v1398 = vsel %vm648, %v1256, 0
        %1400 = vmatprep.subr.bf16.mxu0 0
        %1401 = vmatpush1.bf16.msra.mxu0 %v1372
        %1402 = vmatprep.subr.bf16.mxu0 0
        %1403 = vmatpush1.bf16.msra.mxu0 %v1373
        %1404 = vmatprep.subr.bf16.mxu0 0
        %1405 = vmatpush1.bf16.msra.mxu0 0
        %1406 = vmatprep.subr.bf16.mxu0 0
        %1407 = vmatpush1.bf16.msra.mxu0 0
        %1408 = vmatprep.subr.bf16.mxu0 0
        %1409 = vmatpush1.bf16.msra.mxu0 0
        %1410 = vmatprep.subr.bf16.mxu0 0
        %1411 = vmatpush1.bf16.msra.mxu0 0
        %1412 = vmatprep.subr.bf16.mxu0 0
        %1413 = vmatpush1.bf16.msra.mxu0 0
        %1414 = vmatprep.subr.bf16.mxu0 0
        %1415 = vmatpush1.bf16.msra.mxu0 0
        %1416 = vmatprep.subr.bf16.mxu0 0
        %1417 = vmatpush1.bf16.msra.mxu0 0
        %1418 = vmatprep.subr.bf16.mxu0 0
        %1419 = vmatpush1.bf16.msra.mxu0 0
        %1420 = vmatprep.subr.bf16.mxu0 0
        %1421 = vmatpush1.bf16.msra.mxu0 0
        %1422 = vmatprep.subr.bf16.mxu0 0
        %1423 = vmatpush1.bf16.msra.mxu0 0
        %1424 = vmatprep.subr.bf16.mxu0 0
        %1425 = vmatpush1.bf16.msra.mxu0 0
        %1426 = vmatprep.subr.bf16.mxu0 0
        %1427 = vmatpush1.bf16.msra.mxu0 0
        %1428 = vmatprep.subr.bf16.mxu0 0
        %1429 = vmatpush1.bf16.msra.mxu0 0
        %1430 = vmatprep.subr.bf16.mxu0 0
        %1431 = vmatpush1.bf16.msra.mxu0 0
        %1432 = vmatprep.mubr.bf16.mxu0 0
        %1433 = vmatmul.mubr.bf16.gmra.mrb[0].mxu0 %v1377
        %v1434 = vpop.f32.mrb[0].mxu0
        %v1435 = vadd.f32 %v1348, %v1434
        %v1436 = vpop.f32.mrb[0].mxu0
        %v1437 = vpop.f32.mrb[0].mxu0
        %v1438 = vadd.f32 %v1349, %v1437
        %v1439 = vpop.f32.mrb[0].mxu0
        %1440 = vmatprep.mubr.bf16.mxu0 0
        %1441 = vmatmul.mubr.bf16.gmra.mrb[0].mxu0 %v1380
        %v1442 = vpop.f32.mrb[0].mxu0
        %v1443 = vadd.f32 %v1350, %v1442
        %v1444 = vpop.f32.mrb[0].mxu0
        %v1445 = vpop.f32.mrb[0].mxu0
        %v1446 = vadd.f32 %v1351, %v1445
        %v1447 = vpop.f32.mrb[0].mxu0
        %1448 = vmatprep.mubr.bf16.mxu0 0
        %1449 = vmatmul.mubr.bf16.gmra.mrb[0].mxu0 %v1383
        %v1450 = vpop.f32.mrb[0].mxu0
        %v1451 = vadd.f32 %v1352, %v1450
        %v1452 = vpop.f32.mrb[0].mxu0
        %v1453 = vpop.f32.mrb[0].mxu0
        %v1454 = vadd.f32 %v1353, %v1453
        %v1455 = vpop.f32.mrb[0].mxu0
        %1456 = vmatprep.mubr.bf16.mxu0 0
        %1457 = vmatmul.mubr.bf16.gmra.mrb[0].mxu0 %v1386
        %v1458 = vpop.f32.mrb[0].mxu0
        %v1459 = vadd.f32 %v1354, %v1458
        %v1460 = vpop.f32.mrb[0].mxu0
        %v1461 = vpop.f32.mrb[0].mxu0
        %v1462 = vadd.f32 %v1355, %v1461
        %v1463 = vpop.f32.mrb[0].mxu0
        %1464 = vmatprep.mubr.bf16.mxu0 0
        %1465 = vmatmul.mubr.bf16.gmra.mrb[0].mxu0 %v1389
        %v1466 = vpop.f32.mrb[0].mxu0
        %v1467 = vadd.f32 %v1356, %v1466
        %v1468 = vpop.f32.mrb[0].mxu0
        %v1469 = vpop.f32.mrb[0].mxu0
        %v1470 = vadd.f32 %v1357, %v1469
        %v1471 = vpop.f32.mrb[0].mxu0
        %1472 = vmatprep.mubr.bf16.mxu0 0
        %1473 = vmatmul.mubr.bf16.gmra.mrb[0].mxu0 %v1392
        %v1474 = vpop.f32.mrb[0].mxu0
        %v1475 = vadd.f32 %v1358, %v1474
        %v1476 = vpop.f32.mrb[0].mxu0
        %v1477 = vpop.f32.mrb[0].mxu0
        %v1478 = vadd.f32 %v1359, %v1477
        %v1479 = vpop.f32.mrb[0].mxu0
        %1480 = vmatprep.mubr.bf16.mxu0 0
        %1481 = vmatmul.mubr.bf16.gmra.mrb[0].mxu0 %v1395
        %v1482 = vpop.f32.mrb[0].mxu0
        %v1483 = vadd.f32 %v1360, %v1482
        %v1484 = vpop.f32.mrb[0].mxu0
        %v1485 = vpop.f32.mrb[0].mxu0
        %v1486 = vadd.f32 %v1361, %v1485
        %v1487 = vpop.f32.mrb[0].mxu0
        %1488 = vmatprep.mubr.bf16.mxu0 0
        %1489 = vmatmul.mubr.bf16.gmra.mrb[0].mxu0 %v1398
        %v1490 = vpop.f32.mrb[0].mxu0
        %v1491 = vadd.f32 %v1362, %v1490
        %v1492 = vpop.f32.mrb[0].mxu0
        %v1493 = vpop.f32.mrb[0].mxu0
        %v1494 = vadd.f32 %v1363, %v1493
        %v1495 = vpop.f32.mrb[0].mxu0
        %1496 = vdwg.mxu0
        %v1497 = vld [vmem:[%s9] sm:$0x1]
        %v1499 = vlaneseq
        %v1500 = vshrl.u32 %v1499, 7
        %v1501 = vsub.s32 0, %v1500
        %v1502 = vrot.slane %v1497, %v1501
        %v1504 = vmul.f32 %v1143, %v1502
        %v1505 = vmul.f32 %v1150, %v1502
        %v1506 = vmul.f32 %v1157, %v1502
        %v1507 = vmul.f32 %v1164, %v1502
        %v1508 = vmul.f32 %v1171, %v1502
        %v1509 = vmul.f32 %v1178, %v1502
        %v1510 = vmul.f32 %v1185, %v1502
        %v1511 = vmul.f32 %v1192, %v1502
        %v1512 = vmul.f32 %v1199, %v1502
        %v1513 = vmul.f32 %v1206, %v1502
        %v1514 = vmul.f32 %v1213, %v1502
        %v1515 = vmul.f32 %v1220, %v1502
        %v1516 = vmul.f32 %v1227, %v1502
        %v1517 = vmul.f32 %v1234, %v1502
        %v1518 = vmul.f32 %v1241, %v1502
        %v1519 = vmul.f32 %v1248, %v1502
        %v1520 = vadd.f32 %v1435, %v1504
        %v1521 = vadd.f32 %v1438, %v1505
        %v1522 = vadd.f32 %v1443, %v1506
        %v1523 = vadd.f32 %v1446, %v1507
        %v1524 = vadd.f32 %v1451, %v1508
        %v1525 = vadd.f32 %v1454, %v1509
        %v1526 = vadd.f32 %v1459, %v1510
        %v1527 = vadd.f32 %v1462, %v1511
        %v1528 = vadd.f32 %v1467, %v1512
        %v1529 = vadd.f32 %v1470, %v1513
        %v1530 = vadd.f32 %v1475, %v1514
        %v1531 = vadd.f32 %v1478, %v1515
        %v1532 = vadd.f32 %v1483, %v1516
        %v1533 = vadd.f32 %v1486, %v1517
        %v1534 = vadd.f32 %v1491, %v1518
        %v1535 = vadd.f32 %v1494, %v1519
        %v1536 = vld [vmem:[%s10] sm:$0x1]
        %v1538 = vlaneseq
        %v1539 = vshrl.u32 %v1538, 7
        %v1540 = vsub.s32 0, %v1539
        %v1541 = vrot.slane %v1536, %v1540
        %v1543 = vadd.f32 %v1520, %v1541
        %v1544 = vadd.f32 %v1521, %v1541
        %v1545 = vadd.f32 %v1522, %v1541
        %v1546 = vadd.f32 %v1523, %v1541
        %v1547 = vadd.f32 %v1524, %v1541
        %v1548 = vadd.f32 %v1525, %v1541
        %v1549 = vadd.f32 %v1526, %v1541
        %v1550 = vadd.f32 %v1527, %v1541
        %v1551 = vadd.f32 %v1528, %v1541
        %v1552 = vadd.f32 %v1529, %v1541
        %v1553 = vadd.f32 %v1530, %v1541
        %v1554 = vadd.f32 %v1531, %v1541
        %v1555 = vadd.f32 %v1532, %v1541
        %v1556 = vadd.f32 %v1533, %v1541
        %v1557 = vadd.f32 %v1534, %v1541
        %v1558 = vadd.f32 %v1535, %v1541
        %v1559 = vmax.f32 %v1543, 0.0
        %v1560 = vmax.f32 %v1544, 0.0
        %v1561 = vmax.f32 %v1545, 0.0
        %v1562 = vmax.f32 %v1546, 0.0
        %v1563 = vmax.f32 %v1547, 0.0
        %v1564 = vmax.f32 %v1548, 0.0
        %v1565 = vmax.f32 %v1549, 0.0
        %v1566 = vmax.f32 %v1550, 0.0
        %v1567 = vmax.f32 %v1551, 0.0
        %v1568 = vmax.f32 %v1552, 0.0
        %v1569 = vmax.f32 %v1553, 0.0
        %v1570 = vmax.f32 %v1554, 0.0
        %v1571 = vmax.f32 %v1555, 0.0
        %v1572 = vmax.f32 %v1556, 0.0
        %v1573 = vmax.f32 %v1557, 0.0
        %v1574 = vmax.f32 %v1558, 0.0
        %v1575 = vpack.c.bf16 %v1560, %v1559
        %v1576 = vpack.c.bf16 %v1562, %v1561
        %v1577 = vpack.c.bf16 %v1564, %v1563
        %v1578 = vpack.c.bf16 %v1566, %v1565
        %v1579 = vpack.c.bf16 %v1568, %v1567
        %v1580 = vpack.c.bf16 %v1570, %v1569
        %v1581 = vpack.c.bf16 %v1572, %v1571
        %v1582 = vpack.c.bf16 %v1574, %v1573
        %v1583 = vld [vmem:[%s11] sm:$0xf]
        %v1584 = vld [vmem:[%s11 + $0x4] sm:$0xf]
        %v1585 = vld [vmem:[%s11 + $0x8] sm:$0xf]
        %v1586 = vld [vmem:[%s11 + $0xc] sm:$0xf]
        %v1587 = vld [vmem:[%s12] sm:$0x1]
        %v1589 = vlaneseq
        %v1590 = vshrl.u32 %v1589, 7
        %v1591 = vsub.s32 0, %v1590
        %v1592 = vrot.slane %v1587, %v1591
        %v1598 = vunpack.c.l.b16 %v1583
        %v1599 = vunpack.c.l.b16 %v1584
        %v1600 = vunpack.c.l.b16 %v1585
        %v1601 = vunpack.c.l.b16 %v1586
        %v1602 = vpack.c.b16 %v1599, %v1598
        %v1603 = vpack.c.b16 %v1601, %v1600
        %v1607 = vsel %vm648, %v1575, 0
        %v1610 = vsel %vm648, %v1576, 0
        %v1613 = vsel %vm648, %v1577, 0
        %v1616 = vsel %vm648, %v1578, 0
        %v1619 = vsel %vm648, %v1579, 0
        %v1622 = vsel %vm648, %v1580, 0
        %v1625 = vsel %vm648, %v1581, 0
        %v1628 = vsel %vm648, %v1582, 0
        %1630 = vmatprep.subr.bf16.mxu0 0
        %1631 = vmatpush1.bf16.msra.mxu0 %v1602
        %1632 = vmatprep.subr.bf16.mxu0 0
        %1633 = vmatpush1.bf16.msra.mxu0 %v1603
        %1634 = vmatprep.subr.bf16.mxu0 0
        %1635 = vmatpush1.bf16.msra.mxu0 0
        %1636 = vmatprep.subr.bf16.mxu0 0
        %1637 = vmatpush1.bf16.msra.mxu0 0
        %1638 = vmatprep.subr.bf16.mxu0 0
        %1639 = vmatpush1.bf16.msra.mxu0 0
        %1640 = vmatprep.subr.bf16.mxu0 0
        %1641 = vmatpush1.bf16.msra.mxu0 0
        %1642 = vmatprep.subr.bf16.mxu0 0
        %1643 = vmatpush1.bf16.msra.mxu0 0
        %1644 = vmatprep.subr.bf16.mxu0 0
        %1645 = vmatpush1.bf16.msra.mxu0 0
        %1646 = vmatprep.subr.bf16.mxu0 0
        %1647 = vmatpush1.bf16.msra.mxu0 0
        %1648 = vmatprep.subr.bf16.mxu0 0
        %1649 = vmatpush1.bf16.msra.mxu0 0
        %1650 = vmatprep.subr.bf16.mxu0 0
        %1651 = vmatpush1.bf16.msra.mxu0 0
        %1652 = vmatprep.subr.bf16.mxu0 0
        %1653 = vmatpush1.bf16.msra.mxu0 0
        %1654 = vmatprep.subr.bf16.mxu0 0
        %1655 = vmatpush1.bf16.msra.mxu0 0
        %1656 = vmatprep.subr.bf16.mxu0 0
        %1657 = vmatpush1.bf16.msra.mxu0 0
        %1658 = vmatprep.subr.bf16.mxu0 0
        %1659 = vmatpush1.bf16.msra.mxu0 0
        %1660 = vmatprep.subr.bf16.mxu0 0
        %1661 = vmatpush1.bf16.msra.mxu0 0
        %1662 = vmatprep.mubr.bf16.mxu0 0
        %1663 = vmatmul.mubr.bf16.gmra.mrb[0].mxu0 %v1607
        %v1664 = vpop.f32.mrb[0].mxu0
        %v1665 = vadd.f32 %v1592, %v1664
        %v1666 = vpop.f32.mrb[0].mxu0
        %v1667 = vpop.f32.mrb[0].mxu0
        %v1668 = vadd.f32 %v1592, %v1667
        %v1669 = vpop.f32.mrb[0].mxu0
        %1670 = vmatprep.mubr.bf16.mxu0 0
        %1671 = vmatmul.mubr.bf16.gmra.mrb[0].mxu0 %v1610
        %v1672 = vpop.f32.mrb[0].mxu0
        %v1673 = vadd.f32 %v1592, %v1672
        %v1674 = vpop.f32.mrb[0].mxu0
        %v1675 = vpop.f32.mrb[0].mxu0
        %v1676 = vadd.f32 %v1592, %v1675
        %v1677 = vpop.f32.mrb[0].mxu0
        %1678 = vmatprep.mubr.bf16.mxu0 0
        %1679 = vmatmul.mubr.bf16.gmra.mrb[0].mxu0 %v1613
        %v1680 = vpop.f32.mrb[0].mxu0
        %v1681 = vadd.f32 %v1592, %v1680
        %v1682 = vpop.f32.mrb[0].mxu0
        %v1683 = vpop.f32.mrb[0].mxu0
        %v1684 = vadd.f32 %v1592, %v1683
        %v1685 = vpop.f32.mrb[0].mxu0
        %1686 = vmatprep.mubr.bf16.mxu0 0
        %1687 = vmatmul.mubr.bf16.gmra.mrb[0].mxu0 %v1616
        %v1688 = vpop.f32.mrb[0].mxu0
        %v1689 = vadd.f32 %v1592, %v1688
        %v1690 = vpop.f32.mrb[0].mxu0
        %v1691 = vpop.f32.mrb[0].mxu0
        %v1692 = vadd.f32 %v1592, %v1691
        %v1693 = vpop.f32.mrb[0].mxu0
        %1694 = vmatprep.mubr.bf16.mxu0 0
        %1695 = vmatmul.mubr.bf16.gmra.mrb[0].mxu0 %v1619
        %v1696 = vpop.f32.mrb[0].mxu0
        %v1697 = vadd.f32 %v1592, %v1696
        %v1698 = vpop.f32.mrb[0].mxu0
        %v1699 = vpop.f32.mrb[0].mxu0
        %v1700 = vadd.f32 %v1592, %v1699
        %v1701 = vpop.f32.mrb[0].mxu0
        %1702 = vmatprep.mubr.bf16.mxu0 0
        %1703 = vmatmul.mubr.bf16.gmra.mrb[0].mxu0 %v1622
        %v1704 = vpop.f32.mrb[0].mxu0
        %v1705 = vadd.f32 %v1592, %v1704
        %v1706 = vpop.f32.mrb[0].mxu0
        %v1707 = vpop.f32.mrb[0].mxu0
        %v1708 = vadd.f32 %v1592, %v1707
        %v1709 = vpop.f32.mrb[0].mxu0
        %1710 = vmatprep.mubr.bf16.mxu0 0
        %1711 = vmatmul.mubr.bf16.gmra.mrb[0].mxu0 %v1625
        %v1712 = vpop.f32.mrb[0].mxu0
        %v1713 = vadd.f32 %v1592, %v1712
        %v1714 = vpop.f32.mrb[0].mxu0
        %v1715 = vpop.f32.mrb[0].mxu0
        %v1716 = vadd.f32 %v1592, %v1715
        %v1717 = vpop.f32.mrb[0].mxu0
        %1718 = vmatprep.mubr.bf16.mxu0 0
        %1719 = vmatmul.mubr.bf16.gmra.mrb[0].mxu0 %v1628
        %v1720 = vpop.f32.mrb[0].mxu0
        %v1721 = vadd.f32 %v1592, %v1720
        %v1722 = vpop.f32.mrb[0].mxu0
        %v1723 = vpop.f32.mrb[0].mxu0
        %v1724 = vadd.f32 %v1592, %v1723
        %v1725 = vpop.f32.mrb[0].mxu0
        %1726 = vdwg.mxu0
        %v1727 = vadd.f32 %v930, %v1665
        %v1728 = vadd.f32 %v934, %v1668
        %v1729 = vadd.f32 %v940, %v1673
        %v1730 = vadd.f32 %v944, %v1676
        %v1731 = vadd.f32 %v950, %v1681
        %v1732 = vadd.f32 %v954, %v1684
        %v1733 = vadd.f32 %v960, %v1689
        %v1734 = vadd.f32 %v964, %v1692
        %v1735 = vadd.f32 %v970, %v1697
        %v1736 = vadd.f32 %v974, %v1700
        %v1737 = vadd.f32 %v980, %v1705
        %v1738 = vadd.f32 %v984, %v1708
        %v1739 = vadd.f32 %v990, %v1713
        %v1740 = vadd.f32 %v994, %v1716
        %v1741 = vadd.f32 %v1000, %v1721
        %v1742 = vadd.f32 %v1004, %v1724
        %1743 = vst [vmem:[%s434] sm:$0xff] %v1727
        %1744 = vst [vmem:[%s434 + $0x8] sm:$0xff] %v1728
        %1745 = vst [vmem:[%s434 + $0x10] sm:$0xff] %v1729
        %1746 = vst [vmem:[%s434 + $0x18] sm:$0xff] %v1730
        %1747 = vst [vmem:[%s434 + $0x20] sm:$0xff] %v1731
        %1748 = vst [vmem:[%s434 + $0x28] sm:$0xff] %v1732
        %1749 = vst [vmem:[%s434 + $0x30] sm:$0xff] %v1733
        %1750 = vst [vmem:[%s434 + $0x38] sm:$0xff] %v1734
        %1751 = vst [vmem:[%s434 + $0x40] sm:$0xff] %v1735
        %1752 = vst [vmem:[%s434 + $0x48] sm:$0xff] %v1736
        %1753 = vst [vmem:[%s434 + $0x50] sm:$0xff] %v1737
        %1754 = vst [vmem:[%s434 + $0x58] sm:$0xff] %v1738
        %1755 = vst [vmem:[%s434 + $0x60] sm:$0xff] %v1739
        %1756 = vst [vmem:[%s434 + $0x68] sm:$0xff] %v1740
        %1757 = vst [vmem:[%s434 + $0x70] sm:$0xff] %v1741
        %1758 = vst [vmem:[%s434 + $0x78] sm:$0xff] %v1742
        %1759 = vst.msk [vmem:[%s434] sm:$0xff] %vm648, %v770
        %1760 = vst.msk [vmem:[%s434 + $0x8] sm:$0xff] %vm648, %v771
        %1761 = vst.msk [vmem:[%s434 + $0x10] sm:$0xff] %vm648, %v772
        %1762 = vst.msk [vmem:[%s434 + $0x18] sm:$0xff] %vm648, %v773
        %1763 = vst.msk [vmem:[%s434 + $0x20] sm:$0xff] %vm648, %v774
        %1764 = vst.msk [vmem:[%s434 + $0x28] sm:$0xff] %vm648, %v775
        %1765 = vst.msk [vmem:[%s434 + $0x30] sm:$0xff] %vm648, %v776
        %1766 = vst.msk [vmem:[%s434 + $0x38] sm:$0xff] %vm648, %v777
        %1767 = vst.msk [vmem:[%s434 + $0x40] sm:$0xff] %vm648, %v778
        %1768 = vst.msk [vmem:[%s434 + $0x48] sm:$0xff] %vm648, %v779
        %1769 = vst.msk [vmem:[%s434 + $0x50] sm:$0xff] %vm648, %v780
        %1770 = vst.msk [vmem:[%s434 + $0x58] sm:$0xff] %vm648, %v781
        %1771 = vst.msk [vmem:[%s434 + $0x60] sm:$0xff] %vm648, %v782
        %1772 = vst.msk [vmem:[%s434 + $0x68] sm:$0xff] %vm648, %v783
        %1773 = vst.msk [vmem:[%s434 + $0x70] sm:$0xff] %vm648, %v784
        %1774 = vst.msk [vmem:[%s434 + $0x78] sm:$0xff] %vm648, %v785
        %1775 = vrot.lane.b32.xlu0 %v1056, 9
        %v1776 = vpop.permute.xlu0 %1775
        %1777 = vrot.lane.b32.xlu0 %v1057, 9
        %v1778 = vpop.permute.xlu0 %1777
        %1779 = vrot.lane.b32.xlu0 %v1058, 9
        %v1780 = vpop.permute.xlu0 %1779
        %1781 = vrot.lane.b32.xlu0 %v1059, 9
        %v1782 = vpop.permute.xlu0 %1781
        %1783 = vrot.lane.b32.xlu0 %v1060, 9
        %v1784 = vpop.permute.xlu0 %1783
        %1785 = vrot.lane.b32.xlu0 %v1061, 9
        %v1786 = vpop.permute.xlu0 %1785
        %1787 = vrot.lane.b32.xlu0 %v1062, 9
        %v1788 = vpop.permute.xlu0 %1787
        %1789 = vrot.lane.b32.xlu0 %v1063, 9
        %v1790 = vpop.permute.xlu0 %1789
        %1791 = vrot.lane.b32.xlu0 %v1064, 9
        %v1792 = vpop.permute.xlu0 %1791
        %1793 = vrot.lane.b32.xlu0 %v1065, 9
        %v1794 = vpop.permute.xlu0 %1793
        %1795 = vrot.lane.b32.xlu0 %v1066, 9
        %v1796 = vpop.permute.xlu0 %1795
        %1797 = vrot.lane.b32.xlu0 %v1067, 9
        %v1798 = vpop.permute.xlu0 %1797
        %1799 = vrot.lane.b32.xlu0 %v1068, 9
        %v1800 = vpop.permute.xlu0 %1799
        %1801 = vrot.lane.b32.xlu0 %v1069, 9
        %v1802 = vpop.permute.xlu0 %1801
        %1803 = vrot.lane.b32.xlu0 %v1070, 9
        %v1804 = vpop.permute.xlu0 %1803
        %1805 = vrot.lane.b32.xlu0 %v1071, 9
        %v1806 = vpop.permute.xlu0 %1805
        %vm1823 = vcmask 343368
        %1824 = vst.msk [vmem:[%s434] sm:$0xff] %vm1823, %v1776
        %1825 = vst.msk [vmem:[%s434 + $0x8] sm:$0xff] %vm1823, %v1778
        %1826 = vst.msk [vmem:[%s434 + $0x10] sm:$0xff] %vm1823, %v1780
        %1827 = vst.msk [vmem:[%s434 + $0x18] sm:$0xff] %vm1823, %v1782
        %1828 = vst.msk [vmem:[%s434 + $0x20] sm:$0xff] %vm1823, %v1784
        %1829 = vst.msk [vmem:[%s434 + $0x28] sm:$0xff] %vm1823, %v1786
        %1830 = vst.msk [vmem:[%s434 + $0x30] sm:$0xff] %vm1823, %v1788
        %1831 = vst.msk [vmem:[%s434 + $0x38] sm:$0xff] %vm1823, %v1790
        %1832 = vst.msk [vmem:[%s434 + $0x40] sm:$0xff] %vm1823, %v1792
        %1833 = vst.msk [vmem:[%s434 + $0x48] sm:$0xff] %vm1823, %v1794
        %1834 = vst.msk [vmem:[%s434 + $0x50] sm:$0xff] %vm1823, %v1796
        %1835 = vst.msk [vmem:[%s434 + $0x58] sm:$0xff] %vm1823, %v1798
        %1836 = vst.msk [vmem:[%s434 + $0x60] sm:$0xff] %vm1823, %v1800
        %1837 = vst.msk [vmem:[%s434 + $0x68] sm:$0xff] %vm1823, %v1802
        %1838 = vst.msk [vmem:[%s434 + $0x70] sm:$0xff] %vm1823, %v1804
        %1839 = vst.msk [vmem:[%s434 + $0x78] sm:$0xff] %vm1823, %v1806
        %s1840 = sand.u32 %s313, 1
        %s1841 = scalar_lea.sflag [#allocation3], %s1840
        %s1842 = sand.u32 %s313, 1
        %s1843 = smul.addr %s1842, 128
        %s1844 = scalar_lea.vmem [#allocation2], %s1843
        // Predicated region
        $region73: #{tpu_custom_call.1} parent=71 // pred_check
          %p1845 = pneg %p323
        $region74: #{tpu_custom_call.1} parent=71 // pred_check_branch
          %1847 = sbr.rel (%p1845) target = $region76
        $region75: #{tpu_custom_call.1} parent=71 // pred_region
          %s1848 = smul.u32 16, %s27
          %s1850 = ssub.s32 2048, 2048
          %1851 = vsyncadd %s1841, %s1850
          %s1852 = smul.addr %s1848, 128
          %s1853 = scalar_lea.hbm %s13, %s1852
          %s1854 = sshll.u32 %s1844, 4
          %s1855 = int_to_ptr.vmem [resolvable:$true] %s1854
          %1860 = dma.vmem_to_hbm [thread:$0]  %s1855, 2048, %s1853, %s1841, 128, 128, 8
        $region76: #{tpu_custom_call.1} parent=71 // pred_fallthru
          _
      $region72: #{tpu_custom_call.1} parent=5 // pred_fallthru
        _
      %p1861 = scmp.le.s32.totalorder 2, %s22
      // Predicated region
      $region77: #{tpu_custom_call.1} parent=5 // pred_check
        %p1862 = pneg %p1861
      $region78: #{tpu_custom_call.1} parent=5 // pred_check_branch
        %1864 = sbr.rel (%p1862) target = $region80
      $region79: #{tpu_custom_call.1} parent=5 // pred_region
        %s1865 = ssub.s32 %s22, 2
        // Predicated region
        $region81: #{tpu_custom_call.1} parent=79 // pred_check
          %p1866 = pneg %p329
        $region82: #{tpu_custom_call.1} parent=79 // pred_check_branch
          %1868 = sbr.rel (%p1866) target = $region84
        $region83: #{tpu_custom_call.1} parent=79 // pred_region
          %s1869 = sand.u32 %s314, 1
          %s1870 = scalar_lea.sflag [#allocation3], %s1869
          %s1871 = sand.u32 %s314, 1
          %s1872 = smul.addr %s1871, 128
          %s1873 = scalar_lea.vmem [#allocation2], %s1872
          %1874 = dma.done %s1870, 2048
        $region84: #{tpu_custom_call.1} parent=79 // pred_fallthru
          _
      $region80: #{tpu_custom_call.1} parent=5 // pred_fallthru
        _
    $region6: #{tpu_custom_call.1} parent=1 // loop_footer
      %s26 = sadd.s32 1, %s22
    $region7: #{tpu_custom_call.1} parent=1 // loop_footer_branch
      %21 = sbr.rel target = $region3
    $region8: #{tpu_custom_call.1} parent=1 // loop_exit
      _
    %1875 = vsyncpa [#allocation3], 1
    %s1876 = scalar_lea.sflag [#allocation3], 1
    %1877 = vsyncpa %s1876, 1

</llo_original>
